<compile_context>
chip_gen: v5e
topology: v5e:2x2
jax: 0.10.0
libtpu: 0.0.40
codegen_flags: <defaults>
</compile_context>

<pallas_src>
import functools

import jax
import jax.numpy as jnp
from jax.experimental import pallas as pl
from jax.experimental.pallas import tpu as pltpu

# The PyTorch module references globals Game_Input_C / Game_Output_C.
# Pick small, deterministic values for this synthetic kernel.
GAME_INPUT_C = 32
GAME_OUTPUT_C = 16
MID_C = 64

# Fold ROW_PACK consecutive batch rows into one packed row so every array is
# lane-dense: 8 * C_out = 128 lanes exactly, 8 * C_in = 256, 8 * mid = 512.
ROW_PACK = 8
assert (ROW_PACK * GAME_INPUT_C) % 128 == 0
assert (ROW_PACK * MID_C) % 128 == 0
assert (ROW_PACK * GAME_OUTPUT_C) % 128 == 0   # lane-dense output requires this


def _twolayer_kernel(x_ref, w1_ref, b1_ref, w2_ref, b2_ref, o_ref):
    # x_ref : (block_rows, 8*C_in)        f32    lane-dense input tile (native dtype)
    # w1_ref: (8*C_in,  8*mid)            bf16   block-diagonal, resident
    # b1_ref: (1, 8*mid)                  f32
    # w2_ref: (8*mid,   8*C_out)          bf16   block-diagonal, resident
    # b2_ref: (1, 8*C_out)                f32
    # o_ref : (block_rows, 8*C_out=128)          lane-dense output tile
    x = x_ref[...].astype(w1_ref.dtype)                        # in-VMEM cast to bf16
    h = jnp.dot(x, w1_ref[...], preferred_element_type=jnp.float32)
    h = jnp.maximum(h + b1_ref[...], 0.0)                      # bias + ReLU in f32
    y = jnp.dot(h.astype(w2_ref.dtype), w2_ref[...],
                preferred_element_type=jnp.float32)
    o_ref[...] = (y + b2_ref[...]).astype(o_ref.dtype)


def pack_params(w1_t, b1, w2_t, b2, row_pack=ROW_PACK, compute_dtype=jnp.bfloat16):
    """Build block-diagonal 'row-packed' weights (done once per weight update).

    w1_t: (C_in, mid), b1: (1, mid), w2_t: (mid, C_out), b2: (1, C_out)
    For X2 = X.reshape(B//row_pack, row_pack*C_in) (row-major):
        relu(X2 @ W1_big + b1_big) @ W2_big + b2_big
      == (relu(X @ w1_t + b1) @ w2_t + b2).reshape(B//row_pack, row_pack*C_out)
    """
    eye = jnp.eye(row_pack, dtype=w1_t.dtype)
    w1_big = jnp.kron(eye, w1_t).astype(compute_dtype)          # (8*C_in, 8*mid)
    w2_big = jnp.kron(eye, w2_t).astype(compute_dtype)          # (8*mid, 8*C_out)
    b1_big = jnp.tile(b1.reshape(1, -1), (1, row_pack)).astype(jnp.float32)
    b2_big = jnp.tile(b2.reshape(1, -1), (1, row_pack)).astype(jnp.float32)
    return w1_big, b1_big, w2_big, b2_big


def _choose_block_rows(packed_rows, requested=None):
    """Largest divisor of packed_rows that is a multiple of 8 and <= target.

    Target scales with batch so there are ~8 grid steps (>=4 per v7x TensorCore when
    large), with block_rows clamped to [128, 1024] packed rows; a divisor is required
    so the last grid step is never partial.
    """
    if requested is not None:
        target = min(requested, packed_rows)
    else:
        target = min(max(128, min(1024, packed_rows // 8)), packed_rows)
    target -= target % 8
    for br in range(target, 7, -8):
        if packed_rows % br == 0:
            return br
    return packed_rows  # tiny batches: single full block (always legal)


@functools.partial(jax.jit, static_argnames=("block_rows", "out_dtype"))
def twolayer_forward(x, w1_big, b1_big, w2_big, b2_big,
                     block_rows=None, out_dtype=jnp.float32):
    """x: (B, C_in) float32.  w*_big/b*_big from pack_params.  Returns (B, C_out)."""
    B, c_in = x.shape
    r = ROW_PACK
    rin, rmid = w1_big.shape
    rout = w2_big.shape[1]
    assert rin == r * c_in
    c_out = rout // r

    # Keep x in its native dtype: no wrapper-side astype pass through HBM.
    xb = x
    b_pad = r * pl.cdiv(B, r)
    if b_pad != B:
        # TODO(synk): handle ragged B with a masked last block in-kernel instead of a
        # full-copy pad; the demo keeps B % ROW_PACK == 0 so this path is not hit.
        xb = jnp.pad(xb, ((0, b_pad - B), (0, 0)))
    packed_rows = b_pad // r
    x2 = xb.reshape(packed_rows, rin)          # row-major repack: layout-free reshape

    br = _choose_block_rows(packed_rows, block_rows)
    grid = (packed_rows // br,)

    flops = 2 * packed_rows * (rin * rmid + rmid * rout)
    bytes_accessed = int(
        x2.size * x2.dtype.itemsize
        + packed_rows * rout * jnp.dtype(out_dtype).itemsize
        + w1_big.size * w1_big.dtype.itemsize
        + w2_big.size * w2_big.dtype.itemsize
        + b1_big.size * 4 + b2_big.size * 4)
    cost = pl.CostEstimate(flops=flops, transcendentals=0,
                           bytes_accessed=bytes_accessed)

    out2 = pl.pallas_call(
        _twolayer_kernel,
        out_shape=jax.ShapeDtypeStruct((packed_rows, rout), out_dtype),
        grid_spec=pltpu.PrefetchScalarGridSpec(
            num_scalar_prefetch=0,
            grid=grid,
            in_specs=[
                pl.BlockSpec((br, rin), lambda i: (i, 0)),      # x tile per step
                pl.BlockSpec((rin, rmid), lambda i: (0, 0)),    # W1_big resident
                pl.BlockSpec((1, rmid), lambda i: (0, 0)),      # b1_big resident
                pl.BlockSpec((rmid, rout), lambda i: (0, 0)),   # W2_big resident
                pl.BlockSpec((1, rout), lambda i: (0, 0)),      # b2_big resident
            ],
            out_specs=pl.BlockSpec((br, rout), lambda i: (i, 0)),
        ),
        compiler_params=pltpu.CompilerParams(
            dimension_semantics=("parallel",),
        ),
        cost_estimate=cost,
    )(x2, w1_big, b1_big, w2_big, b2_big)

    # Un-pack: (B_pad/8, 128) -> (B_pad, 16) -> (B, 16).  Pure row-major reshape.
    y = out2.reshape(b_pad, c_out)
    return y[:B] if b_pad != B else y


def reference_forward(x, w1_t, b1, w2_t, b2, compute_dtype=jnp.bfloat16):
    """Same math/precision path as the kernel, in plain JAX (matches PyTorch forward)."""
    xb = x.astype(compute_dtype)
    h = jnp.dot(xb, w1_t.astype(compute_dtype),
                preferred_element_type=jnp.float32) + b1
    h = jnp.maximum(h, 0.0)
    y = jnp.dot(h.astype(compute_dtype), w2_t.astype(compute_dtype),
                preferred_element_type=jnp.float32) + b2
    return y


def init_params(key, in_c=GAME_INPUT_C, mid_c=MID_C, out_c=GAME_OUTPUT_C):
    """Deterministic init mimicking nn.Linear default (uniform(-1/sqrt(fan_in), +))."""
    k1, k2, k3, k4 = jax.random.split(key, 4)
    lim1 = 1.0 / jnp.sqrt(in_c)
    lim2 = 1.0 / jnp.sqrt(mid_c)
    # PyTorch Linear weight is (out, in); store transposed (in, out) for x @ W.
    w1_t = jax.random.uniform(k1, (in_c, mid_c), jnp.float32, -lim1, lim1)
    b1 = jax.random.uniform(k2, (1, mid_c), jnp.float32, -lim1, lim1)
    w2_t = jax.random.uniform(k3, (mid_c, out_c), jnp.float32, -lim2, lim2)
    b2 = jax.random.uniform(k4, (1, out_c), jnp.float32, -lim2, lim2)
    return w1_t, b1, w2_t, b2


if __name__ == "__main__":
    key = jax.random.PRNGKey(0)
    kx, kp = jax.random.split(key)

    # B=4096 -> packed_rows=512, auto block_rows=128 -> 4 grid steps (>=2 per v7x TC),
    # B % ROW_PACK == 0 so no pad, and every grid step is a full (unmasked) block.
    B = 4096
    x = jax.random.normal(kx, (B, GAME_INPUT_C), jnp.float32)
    w1_t, b1, w2_t, b2 = init_params(kp)

    packed = pack_params(w1_t, b1, w2_t, b2)
    y = twolayer_forward(x, *packed)
    y = jax.block_until_ready(y)

    # Pure-JAX reference on the same bf16-input / f32-accumulate path.
    y_ref = reference_forward(x, w1_t, b1, w2_t, b2)
    assert y.shape == (B, GAME_OUTPUT_C)
    assert jnp.allclose(y, y_ref, atol=2e-2, rtol=2e-2), float(
        jnp.max(jnp.abs(y - y_ref)))

    print("KERNEL_OK")
</pallas_src>

<mosaic_0001>
module attributes {stable_mosaic.version = 11 : i64} {
  func.func @_twolayer_kernel(%arg0: i32, %arg1: memref<128x256xf32, #tpu.memory_space<vmem>>, %arg2: memref<256x512xbf16, #tpu.memory_space<vmem>>, %arg3: memref<1x512xf32, #tpu.memory_space<vmem>>, %arg4: memref<512x128xbf16, #tpu.memory_space<vmem>>, %arg5: memref<1x128xf32, #tpu.memory_space<vmem>>, %arg6: memref<128x128xf32, #tpu.memory_space<vmem>>) attributes {dimension_semantics = [#tpu.dimension_semantics<parallel>], iteration_bounds = array<i64: 4>, scalar_prefetch = 0 : i64, scratch_operands = 0 : i64, tpu.core_type = #tpu.core_type<tc>, window_params = [{transform_indices = @transform_0, window_bounds = array<i64: 128, 256>}, {pipeline_mode = #tpu.pipeline_mode<synchronous>, transform_indices = @transform_1, window_bounds = array<i64: 256, 512>}, {pipeline_mode = #tpu.pipeline_mode<synchronous>, transform_indices = @transform_2, window_bounds = array<i64: 1, 512>}, {pipeline_mode = #tpu.pipeline_mode<synchronous>, transform_indices = @transform_3, window_bounds = array<i64: 512, 128>}, {pipeline_mode = #tpu.pipeline_mode<synchronous>, transform_indices = @transform_4, window_bounds = array<i64: 1, 128>}, {transform_indices = @transform_5, window_bounds = array<i64: 128, 128>}]} {
    %c0 = arith.constant 0 : index
    %c0_0 = arith.constant 0 : index
    %0 = vector.load %arg1[%c0, %c0_0] : memref<128x256xf32, #tpu.memory_space<vmem>>, vector<128x256xf32>
    %1 = arith.truncf %0 : vector<128x256xf32> to vector<128x256xbf16>
    %c0_1 = arith.constant 0 : index
    %c0_2 = arith.constant 0 : index
    %2 = vector.load %arg2[%c0_1, %c0_2] : memref<256x512xbf16, #tpu.memory_space<vmem>>, vector<256x512xbf16>
    %cst = arith.constant dense<0.000000e+00> : vector<128x512xf32>
    %3 = tpu.matmul %1, %2, %cst {dimension_numbers = #tpu.dot_dimension_numbers<[1], [0], [0], [1], [0, 0, 1, 1], [], []>} : vector<128x256xbf16>, vector<256x512xbf16>, vector<128x512xf32> -> vector<128x512xf32>
    %c0_3 = arith.constant 0 : index
    %c0_4 = arith.constant 0 : index
    %4 = vector.load %arg3[%c0_3, %c0_4] : memref<1x512xf32, #tpu.memory_space<vmem>>, vector<1x512xf32>
    %5 = vector.broadcast %4 : vector<1x512xf32> to vector<128x512xf32>
    %6 = arith.addf %3, %5 : vector<128x512xf32>
    %cst_5 = arith.constant 0.000000e+00 : f32
    %7 = vector.broadcast %cst_5 : f32 to vector<128x512xf32>
    %8 = arith.maximumf %6, %7 : vector<128x512xf32>
    %9 = arith.truncf %8 : vector<128x512xf32> to vector<128x512xbf16>
    %c0_6 = arith.constant 0 : index
    %c0_7 = arith.constant 0 : index
    %10 = vector.load %arg4[%c0_6, %c0_7] : memref<512x128xbf16, #tpu.memory_space<vmem>>, vector<512x128xbf16>
    %cst_8 = arith.constant dense<0.000000e+00> : vector<128x128xf32>
    %11 = tpu.matmul %9, %10, %cst_8 {dimension_numbers = #tpu.dot_dimension_numbers<[1], [0], [0], [1], [0, 0, 1, 1], [], []>} : vector<128x512xbf16>, vector<512x128xbf16>, vector<128x128xf32> -> vector<128x128xf32>
    %c0_9 = arith.constant 0 : index
    %c0_10 = arith.constant 0 : index
    %12 = vector.load %arg5[%c0_9, %c0_10] : memref<1x128xf32, #tpu.memory_space<vmem>>, vector<1x128xf32>
    %13 = vector.broadcast %12 : vector<1x128xf32> to vector<128x128xf32>
    %14 = arith.addf %11, %13 : vector<128x128xf32>
    %c0_11 = arith.constant 0 : index
    %c0_12 = arith.constant 0 : index
    %15 = vector.load %arg6[%c0_11, %c0_12] : memref<128x128xf32, #tpu.memory_space<vmem>>, vector<128x128xf32>
    tpu.vector_store %arg6[%c0_11, %c0_12], %14 {strides = array<i32>} : memref<128x128xf32, #tpu.memory_space<vmem>>, vector<128x128xf32>,
    return
  }
  func.func @transform_0(%arg0: i32) -> (i32, i32) {
    %c0_i32 = arith.constant 0 : i32
    %c0_i32_0 = arith.constant 0 : i32
    return %arg0, %c0_i32 : i32, i32
  }
  func.func @transform_1(%arg0: i32) -> (i32, i32) {
    %c0_i32 = arith.constant 0 : i32
    %c0_i32_0 = arith.constant 0 : i32
    %c0_i32_1 = arith.constant 0 : i32
    return %c0_i32, %c0_i32_0 : i32, i32
  }
  func.func @transform_2(%arg0: i32) -> (i32, i32) {
    %c0_i32 = arith.constant 0 : i32
    %c0_i32_0 = arith.constant 0 : i32
    %c0_i32_1 = arith.constant 0 : i32
    return %c0_i32, %c0_i32_0 : i32, i32
  }
  func.func @transform_3(%arg0: i32) -> (i32, i32) {
    %c0_i32 = arith.constant 0 : i32
    %c0_i32_0 = arith.constant 0 : i32
    %c0_i32_1 = arith.constant 0 : i32
    return %c0_i32, %c0_i32_0 : i32, i32
  }
  func.func @transform_4(%arg0: i32) -> (i32, i32) {
    %c0_i32 = arith.constant 0 : i32
    %c0_i32_0 = arith.constant 0 : i32
    %c0_i32_1 = arith.constant 0 : i32
    return %c0_i32, %c0_i32_0 : i32, i32
  }
  func.func @transform_5(%arg0: i32) -> (i32, i32) {
    %c0_i32 = arith.constant 0 : i32
    %c0_i32_0 = arith.constant 0 : i32
    return %arg0, %c0_i32 : i32, i32
  }
}

</mosaic_0001>

<llo_original>
// kernel: twolayer_forward.1
$region0: #{twolayer_forward.1}
  #allocation0 [shape = 'u32[]', space=smem, size = 0x4, offset = 0x4, fixed_abs, tag = 'smem constant byte address 0x4 - core index']
  #allocation1 [shape = 'u32[72,128]{1,0:T(1,128)}', space=vmem, size = 0x9000, scoped, tag = 'internal scratch']
  %s0 = inlined_call_operand.vmem [shape: f32[512,256], index: 0, kind: input, shape index: {}]
  %s1 = inlined_call_operand.vmem [shape: bf16[256,512], index: 1, kind: input, shape index: {}]
  %s2 = inlined_call_operand.vmem [shape: f32[1,512], index: 2, kind: input, shape index: {}]
  %s3 = inlined_call_operand.vmem [shape: bf16[512,128], index: 3, kind: input, shape index: {}]
  %s4 = inlined_call_operand.vmem [shape: f32[1,128], index: 4, kind: input, shape index: {}]
  %s5 = inlined_call_operand.vmem [shape: f32[512,128], index: 5, kind: output, shape index: {}]
  %s6 = sld [smem:[#allocation0]]
  $region53: #{twolayer_forward.1} parent=0
    _
  %s8 = ssub.s32 1, %s6
  %s9 = scalar_select 0, %s8, %s6
  loop: start=0, step=1, limit=6
  $region2: #{twolayer_forward.1} parent=0 // loop_pre_header
    _
  $region3: #{twolayer_forward.1} parent=0 // loop_header
    %s11 = sphi 0, %s15
    %p12 = scmp.ge.s32.totalorder %s11, 6
    %s21 = sphi 0, %s23
    %s24 = sphi 0, %s21
    %s25 = sphi 0, %s24
    %s41 = sphi 0, %s25
    %s45 = sphi 0, %s45
    %s47 = sphi 0, %s45
    %s48 = sphi 0, %s47
    %s62 = sphi 0, %s48
    %s66 = sphi 0, %s66
    %s68 = sphi 0, %s66
    %s69 = sphi 0, %s68
    %s83 = sphi 0, %s69
    %s87 = sphi 0, %s87
    %s89 = sphi 0, %s87
    %s90 = sphi 0, %s89
    %s104 = sphi 0, %s90
    %s108 = sphi 0, %s108
    %s110 = sphi 0, %s108
    %s111 = sphi 0, %s110
    %s125 = sphi 0, %s111
    %s131 = sphi 0, %s133
    %s134 = sphi 0, %s131
    %s135 = sphi 0, %s134
    %s151 = sphi 0, %s135
  $region4: #{twolayer_forward.1} parent=0 // loop_header_branch
    %14 = sbr.rel (%p12) target = $region8
  $region5: #{twolayer_forward.1} parent=0 // loop_body
    %s16 = ssub.s32 %s11, 1
    %s17 = ssub.s32 %s11, 2
    %s18 = sadd.s32 %s11, 1
    %s19 = ssub.s32 %s11, %s18
    %p20 = scmp.eq.s32.totalorder %s19, 0
    %s22 = sadd.s32 %s21, 1
    %s23 = scalar_select %p20, %s21, %s22
    %p26 = pneg %p20
    %p27 = scmp.eq.s32.totalorder %s11, 3
    %p28 = por %p26, %p27
    %p29 = scmp.ne.s32.totalorder %s21, %s24
    %p30 = scmp.eq.s32.totalorder %s11, 0
    %p31 = por %p29, %p30
    %p32 = scmp.ne.s32.totalorder %s21, %s24
    %p33 = scmp.eq.s32.totalorder %s16, 3
    %p34 = por %p32, %p33
    %p35 = scmp.ne.s32.totalorder %s24, %s25
    %p36 = scmp.eq.s32.totalorder %s16, 0
    %p37 = por %p35, %p36
    %p38 = scmp.ne.s32.totalorder %s24, %s25
    %p39 = scmp.eq.s32.totalorder %s17, 3
    %p40 = por %p38, %p39
    %p42 = scmp.ne.s32.totalorder %s25, %s41
    %p43 = scmp.eq.s32.totalorder %s17, 0
    %p44 = por %p42, %p43
    %s46 = sadd.s32 %s45, 1
    %p49 = scmp.eq.s32.totalorder %s11, 3
    %p50 = scmp.ne.s32.totalorder %s45, %s47
    %p51 = scmp.eq.s32.totalorder %s11, 0
    %p52 = por %p50, %p51
    %p53 = scmp.ne.s32.totalorder %s45, %s47
    %p54 = scmp.eq.s32.totalorder %s16, 3
    %p55 = por %p53, %p54
    %p56 = scmp.ne.s32.totalorder %s47, %s48
    %p57 = scmp.eq.s32.totalorder %s16, 0
    %p58 = por %p56, %p57
    %p59 = scmp.ne.s32.totalorder %s47, %s48
    %p60 = scmp.eq.s32.totalorder %s17, 3
    %p61 = por %p59, %p60
    %p63 = scmp.ne.s32.totalorder %s48, %s62
    %p64 = scmp.eq.s32.totalorder %s17, 0
    %p65 = por %p63, %p64
    %s67 = sadd.s32 %s66, 1
    %p70 = scmp.eq.s32.totalorder %s11, 3
    %p71 = scmp.ne.s32.totalorder %s66, %s68
    %p72 = scmp.eq.s32.totalorder %s11, 0
    %p73 = por %p71, %p72
    %p74 = scmp.ne.s32.totalorder %s66, %s68
    %p75 = scmp.eq.s32.totalorder %s16, 3
    %p76 = por %p74, %p75
    %p77 = scmp.ne.s32.totalorder %s68, %s69
    %p78 = scmp.eq.s32.totalorder %s16, 0
    %p79 = por %p77, %p78
    %p80 = scmp.ne.s32.totalorder %s68, %s69
    %p81 = scmp.eq.s32.totalorder %s17, 3
    %p82 = por %p80, %p81
    %p84 = scmp.ne.s32.totalorder %s69, %s83
    %p85 = scmp.eq.s32.totalorder %s17, 0
    %p86 = por %p84, %p85
    %s88 = sadd.s32 %s87, 1
    %p91 = scmp.eq.s32.totalorder %s11, 3
    %p92 = scmp.ne.s32.totalorder %s87, %s89
    %p93 = scmp.eq.s32.totalorder %s11, 0
    %p94 = por %p92, %p93
    %p95 = scmp.ne.s32.totalorder %s87, %s89
    %p96 = scmp.eq.s32.totalorder %s16, 3
    %p97 = por %p95, %p96
    %p98 = scmp.ne.s32.totalorder %s89, %s90
    %p99 = scmp.eq.s32.totalorder %s16, 0
    %p100 = por %p98, %p99
    %p101 = scmp.ne.s32.totalorder %s89, %s90
    %p102 = scmp.eq.s32.totalorder %s17, 3
    %p103 = por %p101, %p102
    %p105 = scmp.ne.s32.totalorder %s90, %s104
    %p106 = scmp.eq.s32.totalorder %s17, 0
    %p107 = por %p105, %p106
    %s109 = sadd.s32 %s108, 1
    %p112 = scmp.eq.s32.totalorder %s11, 3
    %p113 = scmp.ne.s32.totalorder %s108, %s110
    %p114 = scmp.eq.s32.totalorder %s11, 0
    %p115 = por %p113, %p114
    %p116 = scmp.ne.s32.totalorder %s108, %s110
    %p117 = scmp.eq.s32.totalorder %s16, 3
    %p118 = por %p116, %p117
    %p119 = scmp.ne.s32.totalorder %s110, %s111
    %p120 = scmp.eq.s32.totalorder %s16, 0
    %p121 = por %p119, %p120
    %p122 = scmp.ne.s32.totalorder %s110, %s111
    %p123 = scmp.eq.s32.totalorder %s17, 3
    %p124 = por %p122, %p123
    %p126 = scmp.ne.s32.totalorder %s111, %s125
    %p127 = scmp.eq.s32.totalorder %s17, 0
    %p128 = por %p126, %p127
    %s129 = ssub.s32 %s11, %s18
    %p130 = scmp.eq.s32.totalorder %s129, 0
    %s132 = sadd.s32 %s131, 1
    %s133 = scalar_select %p130, %s131, %s132
    %p136 = pneg %p130
    %p137 = scmp.eq.s32.totalorder %s11, 3
    %p138 = por %p136, %p137
    %p139 = scmp.ne.s32.totalorder %s131, %s134
    %p140 = scmp.eq.s32.totalorder %s11, 0
    %p141 = por %p139, %p140
    %p142 = scmp.ne.s32.totalorder %s131, %s134
    %p143 = scmp.eq.s32.totalorder %s16, 3
    %p144 = por %p142, %p143
    %p145 = scmp.ne.s32.totalorder %s134, %s135
    %p146 = scmp.eq.s32.totalorder %s16, 0
    %p147 = por %p145, %p146
    %p148 = scmp.ne.s32.totalorder %s134, %s135
    %p149 = scmp.eq.s32.totalorder %s17, 3
    %p150 = por %p148, %p149
    %p152 = scmp.ne.s32.totalorder %s135, %s151
    %p153 = scmp.eq.s32.totalorder %s17, 0
    %p154 = por %p152, %p153
    %p155 = scmp.le.s32.totalorder 1, %s11
    %p156 = scmp.lt.s32.totalorder %s11, 5
    %p157 = pnand %p155, %p156
    %p158 = pneg %p157
    // Predicated region
    $region9: #{twolayer_forward.1} parent=5 // pred_check
      _
    $region10: #{twolayer_forward.1} parent=5 // pred_check_branch
      %160 = sbr.rel (%p157) target = $region12
    $region11: #{twolayer_forward.1} parent=5 // pred_region
      %s161 = ssub.s32 %s11, 1
      // Predicated region
      $region13: #{twolayer_forward.1} parent=11 // pred_check
        %p162 = pneg %p58
      $region14: #{twolayer_forward.1} parent=11 // pred_check_branch
        %164 = sbr.rel (%p162) target = $region16
      $region15: #{twolayer_forward.1} parent=11 // pred_region
        _
      $region16: #{twolayer_forward.1} parent=11 // pred_fallthru
        _
      // Predicated region
      $region17: #{twolayer_forward.1} parent=11 // pred_check
        %p165 = pneg %p79
      $region18: #{twolayer_forward.1} parent=11 // pred_check_branch
        %167 = sbr.rel (%p165) target = $region20
      $region19: #{twolayer_forward.1} parent=11 // pred_region
        _
      $region20: #{twolayer_forward.1} parent=11 // pred_fallthru
        _
      // Predicated region
      $region21: #{twolayer_forward.1} parent=11 // pred_check
        %p168 = pneg %p100
      $region22: #{twolayer_forward.1} parent=11 // pred_check_branch
        %170 = sbr.rel (%p168) target = $region24
      $region23: #{twolayer_forward.1} parent=11 // pred_region
        _
      $region24: #{twolayer_forward.1} parent=11 // pred_fallthru
        _
      // Predicated region
      $region25: #{twolayer_forward.1} parent=11 // pred_check
        %p171 = pneg %p121
      $region26: #{twolayer_forward.1} parent=11 // pred_check_branch
        %173 = sbr.rel (%p171) target = $region28
      $region27: #{twolayer_forward.1} parent=11 // pred_region
        _
      $region28: #{twolayer_forward.1} parent=11 // pred_fallthru
        _
    $region12: #{twolayer_forward.1} parent=5 // pred_fallthru
      _
    %p174 = scmp.lt.s32.totalorder %s11, 4
    // Predicated region
    $region29: #{twolayer_forward.1} parent=5 // pred_check
      %p175 = pneg %p174
    $region30: #{twolayer_forward.1} parent=5 // pred_check_branch
      %177 = sbr.rel (%p175) target = $region32
    $region31: #{twolayer_forward.1} parent=5 // pred_region
      // Predicated region
      $region33: #{twolayer_forward.1} parent=31 // pred_check
        %p178 = pneg %p31
      $region34: #{twolayer_forward.1} parent=31 // pred_check_branch
        %180 = sbr.rel (%p178) target = $region36
      $region35: #{twolayer_forward.1} parent=31 // pred_region
        %s181 = smul.u32 16, %s11
        %p182 = scmp.lt.s32.totalorder %s181, 63
        %s183 = scalar_select %p182, %s181, 63
        %s184 = smul.addr %s183, 2
        %s185 = smul.addr %s184, 8
        %s186 = scalar_lea.vmem %s0, %s185
        %s187 = smul.u32 16, %s11
      $region36: #{twolayer_forward.1} parent=31 // pred_fallthru
        _
    $region32: #{twolayer_forward.1} parent=5 // pred_fallthru
      _
    %p188 = scmp.le.s32.totalorder 1, %s11
    %p189 = scmp.lt.s32.totalorder %s11, 5
    %p190 = pnand %p188, %p189
    %p191 = pneg %p190
    // Predicated region
    $region37: #{twolayer_forward.1} parent=5 // pred_check
      _
    $region38: #{twolayer_forward.1} parent=5 // pred_check_branch
      %193 = sbr.rel (%p190) target = $region40
    $region39: #{twolayer_forward.1} parent=5 // pred_region
      %s194 = ssub.s32 %s11, 1
      %s195 = smul.u32 16, %s16
      %p196 = scmp.lt.s32.totalorder %s195, 63
      %s197 = scalar_select %p196, %s195, 63
      %s198 = smul.addr %s197, 2
      %s199 = smul.addr %s198, 8
      %s200 = scalar_lea.vmem %s0, %s199
      %p201 = pneg %p37
      %p202 = pneg %p34
      %p203 = pneg %p58
      %p204 = pneg %p55
      %p205 = pneg %p79
      %p206 = pneg %p76
      %p207 = pneg %p100
      %p208 = pneg %p97
      %p209 = pneg %p121
      %p210 = pneg %p118
      %p211 = pneg %p147
      %p212 = pneg %p144
      %s213 = smul.u32 16, %s16
      %p214 = scmp.lt.s32.totalorder %s213, 63
      %s215 = scalar_select %p214, %s213, 63
      %s216 = smul.addr %s215, 8
      %s217 = scalar_lea.vmem %s5, %s216
      %s218 = smul.u32 16, %s16
      %p219 = scmp.lt.s32.totalorder %s218, 63
      %s220 = scalar_select %p219, %s218, 63
      %s221 = smul.addr %s220, 2
      %s222 = smul.addr %s221, 8
      %s223 = scalar_lea.vmem %s0, %s222
      %s224 = smul.u32 16, %s16
      %s225 = smul.u32 16, %s16
      %p226 = scmp.lt.s32.totalorder %s225, 63
      %s227 = scalar_select %p226, %s225, 63
      %s228 = smul.addr %s227, 8
      %s229 = scalar_lea.vmem %s5, %s228
      %s230 = smul.u32 16, %s16
      %v231 = vld [vmem:[%s223] sm:$0xff]
      %v232 = vld [vmem:[%s223 + $0x8] sm:$0xff]
      %v233 = vld [vmem:[%s223 + $0x10] sm:$0xff]
      %v234 = vld [vmem:[%s223 + $0x18] sm:$0xff]
      %v235 = vld [vmem:[%s223 + $0x20] sm:$0xff]
      %v236 = vld [vmem:[%s223 + $0x28] sm:$0xff]
      %v237 = vld [vmem:[%s223 + $0x30] sm:$0xff]
      %v238 = vld [vmem:[%s223 + $0x38] sm:$0xff]
      %v239 = vld [vmem:[%s223 + $0x40] sm:$0xff]
      %v240 = vld [vmem:[%s223 + $0x48] sm:$0xff]
      %v241 = vld [vmem:[%s223 + $0x50] sm:$0xff]
      %v242 = vld [vmem:[%s223 + $0x58] sm:$0xff]
      %v243 = vld [vmem:[%s223 + $0x60] sm:$0xff]
      %v244 = vld [vmem:[%s223 + $0x68] sm:$0xff]
      %v245 = vld [vmem:[%s223 + $0x70] sm:$0xff]
      %v246 = vld [vmem:[%s223 + $0x78] sm:$0xff]
      %v247 = vld [vmem:[%s223 + $0x80] sm:$0xff]
      %v248 = vld [vmem:[%s223 + $0x88] sm:$0xff]
      %v249 = vld [vmem:[%s223 + $0x90] sm:$0xff]
      %v250 = vld [vmem:[%s223 + $0x98] sm:$0xff]
      %v251 = vld [vmem:[%s223 + $0xa0] sm:$0xff]
      %v252 = vld [vmem:[%s223 + $0xa8] sm:$0xff]
      %v253 = vld [vmem:[%s223 + $0xb0] sm:$0xff]
      %v254 = vld [vmem:[%s223 + $0xb8] sm:$0xff]
      %v255 = vld [vmem:[%s223 + $0xc0] sm:$0xff]
      %v256 = vld [vmem:[%s223 + $0xc8] sm:$0xff]
      %v257 = vld [vmem:[%s223 + $0xd0] sm:$0xff]
      %v258 = vld [vmem:[%s223 + $0xd8] sm:$0xff]
      %v259 = vld [vmem:[%s223 + $0xe0] sm:$0xff]
      %v260 = vld [vmem:[%s223 + $0xe8] sm:$0xff]
      %v261 = vld [vmem:[%s223 + $0xf0] sm:$0xff]
      %v262 = vld [vmem:[%s223 + $0xf8] sm:$0xff]
      %v263 = vpack.c.bf16 %v233, %v231
      %v264 = vpack.c.bf16 %v234, %v232
      %v265 = vpack.c.bf16 %v237, %v235
      %v266 = vpack.c.bf16 %v238, %v236
      %v267 = vpack.c.bf16 %v241, %v239
      %v268 = vpack.c.bf16 %v242, %v240
      %v269 = vpack.c.bf16 %v245, %v243
      %v270 = vpack.c.bf16 %v246, %v244
      %v271 = vpack.c.bf16 %v249, %v247
      %v272 = vpack.c.bf16 %v250, %v248
      %v273 = vpack.c.bf16 %v253, %v251
      %v274 = vpack.c.bf16 %v254, %v252
      %v275 = vpack.c.bf16 %v257, %v255
      %v276 = vpack.c.bf16 %v258, %v256
      %v277 = vpack.c.bf16 %v261, %v259
      %v278 = vpack.c.bf16 %v262, %v260
      %v279 = vld [vmem:[%s1] sm:$0xff]
      %v280 = vld [vmem:[%s1 + $0x8] sm:$0xff]
      %v281 = vld [vmem:[%s1 + $0x10] sm:$0xff]
      %v282 = vld [vmem:[%s1 + $0x18] sm:$0xff]
      %v283 = vld [vmem:[%s1 + $0x20] sm:$0xff]
      %v284 = vld [vmem:[%s1 + $0x28] sm:$0xff]
      %v285 = vld [vmem:[%s1 + $0x30] sm:$0xff]
      %v286 = vld [vmem:[%s1 + $0x38] sm:$0xff]
      %v287 = vld [vmem:[%s1 + $0x40] sm:$0xff]
      %v288 = vld [vmem:[%s1 + $0x48] sm:$0xff]
      %v289 = vld [vmem:[%s1 + $0x50] sm:$0xff]
      %v290 = vld [vmem:[%s1 + $0x58] sm:$0xff]
      %v291 = vld [vmem:[%s1 + $0x60] sm:$0xff]
      %v292 = vld [vmem:[%s1 + $0x68] sm:$0xff]
      %v293 = vld [vmem:[%s1 + $0x70] sm:$0xff]
      %v294 = vld [vmem:[%s1 + $0x78] sm:$0xff]
      %v295 = vld [vmem:[%s1 + $0x80] sm:$0xff]
      %v296 = vld [vmem:[%s1 + $0x88] sm:$0xff]
      %v297 = vld [vmem:[%s1 + $0x90] sm:$0xff]
      %v298 = vld [vmem:[%s1 + $0x98] sm:$0xff]
      %v299 = vld [vmem:[%s1 + $0xa0] sm:$0xff]
      %v300 = vld [vmem:[%s1 + $0xa8] sm:$0xff]
      %v301 = vld [vmem:[%s1 + $0xb0] sm:$0xff]
      %v302 = vld [vmem:[%s1 + $0xb8] sm:$0xff]
      %v303 = vld [vmem:[%s1 + $0xc0] sm:$0xff]
      %v304 = vld [vmem:[%s1 + $0xc8] sm:$0xff]
      %v305 = vld [vmem:[%s1 + $0xd0] sm:$0xff]
      %v306 = vld [vmem:[%s1 + $0xd8] sm:$0xff]
      %v307 = vld [vmem:[%s1 + $0xe0] sm:$0xff]
      %v308 = vld [vmem:[%s1 + $0xe8] sm:$0xff]
      %v309 = vld [vmem:[%s1 + $0xf0] sm:$0xff]
      %v310 = vld [vmem:[%s1 + $0xf8] sm:$0xff]
      %v311 = vld [vmem:[%s1 + $0x100] sm:$0xff]
      %v312 = vld [vmem:[%s1 + $0x108] sm:$0xff]
      %v313 = vld [vmem:[%s1 + $0x110] sm:$0xff]
      %v314 = vld [vmem:[%s1 + $0x118] sm:$0xff]
      %v315 = vld [vmem:[%s1 + $0x120] sm:$0xff]
      %v316 = vld [vmem:[%s1 + $0x128] sm:$0xff]
      %v317 = vld [vmem:[%s1 + $0x130] sm:$0xff]
      %v318 = vld [vmem:[%s1 + $0x138] sm:$0xff]
      %v319 = vld [vmem:[%s1 + $0x140] sm:$0xff]
      %v320 = vld [vmem:[%s1 + $0x148] sm:$0xff]
      %v321 = vld [vmem:[%s1 + $0x150] sm:$0xff]
      %v322 = vld [vmem:[%s1 + $0x158] sm:$0xff]
      %v323 = vld [vmem:[%s1 + $0x160] sm:$0xff]
      %v324 = vld [vmem:[%s1 + $0x168] sm:$0xff]
      %v325 = vld [vmem:[%s1 + $0x170] sm:$0xff]
      %v326 = vld [vmem:[%s1 + $0x178] sm:$0xff]
      %v327 = vld [vmem:[%s1 + $0x180] sm:$0xff]
      %v328 = vld [vmem:[%s1 + $0x188] sm:$0xff]
      %v329 = vld [vmem:[%s1 + $0x190] sm:$0xff]
      %v330 = vld [vmem:[%s1 + $0x198] sm:$0xff]
      %v331 = vld [vmem:[%s1 + $0x1a0] sm:$0xff]
      %v332 = vld [vmem:[%s1 + $0x1a8] sm:$0xff]
      %v333 = vld [vmem:[%s1 + $0x1b0] sm:$0xff]
      %v334 = vld [vmem:[%s1 + $0x1b8] sm:$0xff]
      %v335 = vld [vmem:[%s1 + $0x1c0] sm:$0xff]
      %v336 = vld [vmem:[%s1 + $0x1c8] sm:$0xff]
      %v337 = vld [vmem:[%s1 + $0x1d0] sm:$0xff]
      %v338 = vld [vmem:[%s1 + $0x1d8] sm:$0xff]
      %v339 = vld [vmem:[%s1 + $0x1e0] sm:$0xff]
      %v340 = vld [vmem:[%s1 + $0x1e8] sm:$0xff]
      %v341 = vld [vmem:[%s1 + $0x1f0] sm:$0xff]
      %v342 = vld [vmem:[%s1 + $0x1f8] sm:$0xff]
      %v343 = vld [vmem:[%s2] sm:$0xf]
      %v345 = vperm.slane %v343, 0
      %v346 = vperm.slane %v343, 1
      %v347 = vperm.slane %v343, 2
      %v348 = vperm.slane %v343, 3
      %v417 = vunpack.c.l.b16 %v279
      %v418 = vunpack.c.h.b16 %v279
      %v419 = vunpack.c.l.b16 %v280
      %v420 = vunpack.c.h.b16 %v280
      %v421 = vunpack.c.l.b16 %v281
      %v422 = vunpack.c.h.b16 %v281
      %v423 = vunpack.c.l.b16 %v282
      %v424 = vunpack.c.h.b16 %v282
      %v425 = vunpack.c.l.b16 %v283
      %v426 = vunpack.c.h.b16 %v283
      %v427 = vunpack.c.l.b16 %v284
      %v428 = vunpack.c.h.b16 %v284
      %v429 = vunpack.c.l.b16 %v285
      %v430 = vunpack.c.h.b16 %v285
      %v431 = vunpack.c.l.b16 %v286
      %v432 = vunpack.c.h.b16 %v286
      %v433 = vunpack.c.l.b16 %v287
      %v434 = vunpack.c.h.b16 %v287
      %v435 = vunpack.c.l.b16 %v288
      %v436 = vunpack.c.h.b16 %v288
      %v437 = vunpack.c.l.b16 %v289
      %v438 = vunpack.c.h.b16 %v289
      %v439 = vunpack.c.l.b16 %v290
      %v440 = vunpack.c.h.b16 %v290
      %v441 = vunpack.c.l.b16 %v291
      %v442 = vunpack.c.h.b16 %v291
      %v443 = vunpack.c.l.b16 %v292
      %v444 = vunpack.c.h.b16 %v292
      %v445 = vunpack.c.l.b16 %v293
      %v446 = vunpack.c.h.b16 %v293
      %v447 = vunpack.c.l.b16 %v294
      %v448 = vunpack.c.h.b16 %v294
      %v449 = vunpack.c.l.b16 %v295
      %v450 = vunpack.c.h.b16 %v295
      %v451 = vunpack.c.l.b16 %v296
      %v452 = vunpack.c.h.b16 %v296
      %v453 = vunpack.c.l.b16 %v297
      %v454 = vunpack.c.h.b16 %v297
      %v455 = vunpack.c.l.b16 %v298
      %v456 = vunpack.c.h.b16 %v298
      %v457 = vunpack.c.l.b16 %v299
      %v458 = vunpack.c.h.b16 %v299
      %v459 = vunpack.c.l.b16 %v300
      %v460 = vunpack.c.h.b16 %v300
      %v461 = vunpack.c.l.b16 %v301
      %v462 = vunpack.c.h.b16 %v301
      %v463 = vunpack.c.l.b16 %v302
      %v464 = vunpack.c.h.b16 %v302
      %v465 = vunpack.c.l.b16 %v303
      %v466 = vunpack.c.h.b16 %v303
      %v467 = vunpack.c.l.b16 %v304
      %v468 = vunpack.c.h.b16 %v304
      %v469 = vunpack.c.l.b16 %v305
      %v470 = vunpack.c.h.b16 %v305
      %v471 = vunpack.c.l.b16 %v306
      %v472 = vunpack.c.h.b16 %v306
      %v473 = vunpack.c.l.b16 %v307
      %v474 = vunpack.c.h.b16 %v307
      %v475 = vunpack.c.l.b16 %v308
      %v476 = vunpack.c.h.b16 %v308
      %v477 = vunpack.c.l.b16 %v309
      %v478 = vunpack.c.h.b16 %v309
      %v479 = vunpack.c.l.b16 %v310
      %v480 = vunpack.c.h.b16 %v310
      %v481 = vunpack.c.l.b16 %v311
      %v482 = vunpack.c.h.b16 %v311
      %v483 = vunpack.c.l.b16 %v312
      %v484 = vunpack.c.h.b16 %v312
      %v485 = vunpack.c.l.b16 %v313
      %v486 = vunpack.c.h.b16 %v313
      %v487 = vunpack.c.l.b16 %v314
      %v488 = vunpack.c.h.b16 %v314
      %v489 = vunpack.c.l.b16 %v315
      %v490 = vunpack.c.h.b16 %v315
      %v491 = vunpack.c.l.b16 %v316
      %v492 = vunpack.c.h.b16 %v316
      %v493 = vunpack.c.l.b16 %v317
      %v494 = vunpack.c.h.b16 %v317
      %v495 = vunpack.c.l.b16 %v318
      %v496 = vunpack.c.h.b16 %v318
      %v497 = vunpack.c.l.b16 %v319
      %v498 = vunpack.c.h.b16 %v319
      %v499 = vunpack.c.l.b16 %v320
      %v500 = vunpack.c.h.b16 %v320
      %v501 = vunpack.c.l.b16 %v321
      %v502 = vunpack.c.h.b16 %v321
      %v503 = vunpack.c.l.b16 %v322
      %v504 = vunpack.c.h.b16 %v322
      %v505 = vunpack.c.l.b16 %v323
      %v506 = vunpack.c.h.b16 %v323
      %v507 = vunpack.c.l.b16 %v324
      %v508 = vunpack.c.h.b16 %v324
      %v509 = vunpack.c.l.b16 %v325
      %v510 = vunpack.c.h.b16 %v325
      %v511 = vunpack.c.l.b16 %v326
      %v512 = vunpack.c.h.b16 %v326
      %v513 = vunpack.c.l.b16 %v327
      %v514 = vunpack.c.h.b16 %v327
      %v515 = vunpack.c.l.b16 %v328
      %v516 = vunpack.c.h.b16 %v328
      %v517 = vunpack.c.l.b16 %v329
      %v518 = vunpack.c.h.b16 %v329
      %v519 = vunpack.c.l.b16 %v330
      %v520 = vunpack.c.h.b16 %v330
      %v521 = vunpack.c.l.b16 %v331
      %v522 = vunpack.c.h.b16 %v331
      %v523 = vunpack.c.l.b16 %v332
      %v524 = vunpack.c.h.b16 %v332
      %v525 = vunpack.c.l.b16 %v333
      %v526 = vunpack.c.h.b16 %v333
      %v527 = vunpack.c.l.b16 %v334
      %v528 = vunpack.c.h.b16 %v334
      %v529 = vunpack.c.l.b16 %v335
      %v530 = vunpack.c.h.b16 %v335
      %v531 = vunpack.c.l.b16 %v336
      %v532 = vunpack.c.h.b16 %v336
      %v533 = vunpack.c.l.b16 %v337
      %v534 = vunpack.c.h.b16 %v337
      %v535 = vunpack.c.l.b16 %v338
      %v536 = vunpack.c.h.b16 %v338
      %v537 = vunpack.c.l.b16 %v339
      %v538 = vunpack.c.h.b16 %v339
      %v539 = vunpack.c.l.b16 %v340
      %v540 = vunpack.c.h.b16 %v340
      %v541 = vunpack.c.l.b16 %v341
      %v542 = vunpack.c.h.b16 %v341
      %v543 = vunpack.c.l.b16 %v342
      %v544 = vunpack.c.h.b16 %v342
      %v545 = vpack.c.b16 %v421, %v417
      %v546 = vpack.c.b16 %v422, %v418
      %v547 = vpack.c.b16 %v423, %v419
      %v548 = vpack.c.b16 %v424, %v420
      %v549 = vpack.c.b16 %v429, %v425
      %v550 = vpack.c.b16 %v430, %v426
      %v551 = vpack.c.b16 %v431, %v427
      %v552 = vpack.c.b16 %v432, %v428
      %v553 = vpack.c.b16 %v437, %v433
      %v554 = vpack.c.b16 %v438, %v434
      %v555 = vpack.c.b16 %v439, %v435
      %v556 = vpack.c.b16 %v440, %v436
      %v557 = vpack.c.b16 %v445, %v441
      %v558 = vpack.c.b16 %v446, %v442
      %v559 = vpack.c.b16 %v447, %v443
      %v560 = vpack.c.b16 %v448, %v444
      %v561 = vpack.c.b16 %v453, %v449
      %v562 = vpack.c.b16 %v454, %v450
      %v563 = vpack.c.b16 %v455, %v451
      %v564 = vpack.c.b16 %v456, %v452
      %v565 = vpack.c.b16 %v461, %v457
      %v566 = vpack.c.b16 %v462, %v458
      %v567 = vpack.c.b16 %v463, %v459
      %v568 = vpack.c.b16 %v464, %v460
      %v569 = vpack.c.b16 %v469, %v465
      %v570 = vpack.c.b16 %v470, %v466
      %v571 = vpack.c.b16 %v471, %v467
      %v572 = vpack.c.b16 %v472, %v468
      %v573 = vpack.c.b16 %v477, %v473
      %v574 = vpack.c.b16 %v478, %v474
      %v575 = vpack.c.b16 %v479, %v475
      %v576 = vpack.c.b16 %v480, %v476
      %v577 = vpack.c.b16 %v485, %v481
      %v578 = vpack.c.b16 %v486, %v482
      %v579 = vpack.c.b16 %v487, %v483
      %v580 = vpack.c.b16 %v488, %v484
      %v581 = vpack.c.b16 %v493, %v489
      %v582 = vpack.c.b16 %v494, %v490
      %v583 = vpack.c.b16 %v495, %v491
      %v584 = vpack.c.b16 %v496, %v492
      %v585 = vpack.c.b16 %v501, %v497
      %v586 = vpack.c.b16 %v502, %v498
      %v587 = vpack.c.b16 %v503, %v499
      %v588 = vpack.c.b16 %v504, %v500
      %v589 = vpack.c.b16 %v509, %v505
      %v590 = vpack.c.b16 %v510, %v506
      %v591 = vpack.c.b16 %v511, %v507
      %v592 = vpack.c.b16 %v512, %v508
      %v593 = vpack.c.b16 %v517, %v513
      %v594 = vpack.c.b16 %v518, %v514
      %v595 = vpack.c.b16 %v519, %v515
      %v596 = vpack.c.b16 %v520, %v516
      %v597 = vpack.c.b16 %v525, %v521
      %v598 = vpack.c.b16 %v526, %v522
      %v599 = vpack.c.b16 %v527, %v523
      %v600 = vpack.c.b16 %v528, %v524
      %v601 = vpack.c.b16 %v533, %v529
      %v602 = vpack.c.b16 %v534, %v530
      %v603 = vpack.c.b16 %v535, %v531
      %v604 = vpack.c.b16 %v536, %v532
      %v605 = vpack.c.b16 %v541, %v537
      %v606 = vpack.c.b16 %v542, %v538
      %v607 = vpack.c.b16 %v543, %v539
      %v608 = vpack.c.b16 %v544, %v540
      %673 = vmatpush.bf16.msra.mxu0 %v573
      %674 = vmatpush.bf16.msra.mxu0 %v569
      %675 = vmatpush.bf16.msra.mxu0 %v565
      %676 = vmatpush.bf16.msra.mxu0 %v561
      %677 = vmatpush.bf16.msra.mxu0 %v557
      %678 = vmatpush.bf16.msra.mxu0 %v553
      %679 = vmatpush.bf16.msra.mxu0 %v549
      %680 = vmatpush.bf16.msra.mxu0 %v545
      %681 = vmatmul.bf16.gmra.mxu0 %v263
      %v682 = vpop.f32.mrf.mxu0
      %v683 = vadd.f32 %v345, %v682
      %v684 = vpop.f32.mrf.mxu0
      %v685 = vadd.f32 %v345, %v684
      %686 = vmatmul.bf16.gmra.mxu0 %v265
      %v687 = vpop.f32.mrf.mxu0
      %v688 = vadd.f32 %v345, %v687
      %v689 = vpop.f32.mrf.mxu0
      %v690 = vadd.f32 %v345, %v689
      %691 = vmatmul.bf16.gmra.mxu0 %v267
      %v692 = vpop.f32.mrf.mxu0
      %v693 = vadd.f32 %v345, %v692
      %v694 = vpop.f32.mrf.mxu0
      %v695 = vadd.f32 %v345, %v694
      %696 = vmatmul.bf16.gmra.mxu0 %v269
      %v697 = vpop.f32.mrf.mxu0
      %v698 = vadd.f32 %v345, %v697
      %v699 = vpop.f32.mrf.mxu0
      %v700 = vadd.f32 %v345, %v699
      %701 = vmatmul.bf16.gmra.mxu0 %v271
      %v702 = vpop.f32.mrf.mxu0
      %v703 = vadd.f32 %v345, %v702
      %v704 = vpop.f32.mrf.mxu0
      %v705 = vadd.f32 %v345, %v704
      %706 = vmatmul.bf16.gmra.mxu0 %v273
      %v707 = vpop.f32.mrf.mxu0
      %v708 = vadd.f32 %v345, %v707
      %v709 = vpop.f32.mrf.mxu0
      %v710 = vadd.f32 %v345, %v709
      %711 = vmatmul.bf16.gmra.mxu0 %v275
      %v712 = vpop.f32.mrf.mxu0
      %v713 = vadd.f32 %v345, %v712
      %v714 = vpop.f32.mrf.mxu0
      %v715 = vadd.f32 %v345, %v714
      %716 = vmatmul.bf16.gmra.mxu0 %v277
      %v717 = vpop.f32.mrf.mxu0
      %v718 = vadd.f32 %v345, %v717
      %v719 = vpop.f32.mrf.mxu0
      %v720 = vadd.f32 %v345, %v719
      %721 = vdwg.mxu0
      %722 = vmatpush.bf16.msra.mxu0 %v605
      %723 = vmatpush.bf16.msra.mxu0 %v601
      %724 = vmatpush.bf16.msra.mxu0 %v597
      %725 = vmatpush.bf16.msra.mxu0 %v593
      %726 = vmatpush.bf16.msra.mxu0 %v589
      %727 = vmatpush.bf16.msra.mxu0 %v585
      %728 = vmatpush.bf16.msra.mxu0 %v581
      %729 = vmatpush.bf16.msra.mxu0 %v577
      %730 = vmatmul.bf16.gmra.mxu0 %v264
      %v731 = vpop.f32.mrf.mxu0
      %v732 = vadd.f32 %v683, %v731
      %v733 = vpop.f32.mrf.mxu0
      %v734 = vadd.f32 %v685, %v733
      %735 = vmatmul.bf16.gmra.mxu0 %v266
      %v736 = vpop.f32.mrf.mxu0
      %v737 = vadd.f32 %v688, %v736
      %v738 = vpop.f32.mrf.mxu0
      %v739 = vadd.f32 %v690, %v738
      %740 = vmatmul.bf16.gmra.mxu0 %v268
      %v741 = vpop.f32.mrf.mxu0
      %v742 = vadd.f32 %v693, %v741
      %v743 = vpop.f32.mrf.mxu0
      %v744 = vadd.f32 %v695, %v743
      %745 = vmatmul.bf16.gmra.mxu0 %v270
      %v746 = vpop.f32.mrf.mxu0
      %v747 = vadd.f32 %v698, %v746
      %v748 = vpop.f32.mrf.mxu0
      %v749 = vadd.f32 %v700, %v748
      %750 = vmatmul.bf16.gmra.mxu0 %v272
      %v751 = vpop.f32.mrf.mxu0
      %v752 = vadd.f32 %v703, %v751
      %v753 = vpop.f32.mrf.mxu0
      %v754 = vadd.f32 %v705, %v753
      %755 = vmatmul.bf16.gmra.mxu0 %v274
      %v756 = vpop.f32.mrf.mxu0
      %v757 = vadd.f32 %v708, %v756
      %v758 = vpop.f32.mrf.mxu0
      %v759 = vadd.f32 %v710, %v758
      %760 = vmatmul.bf16.gmra.mxu0 %v276
      %v761 = vpop.f32.mrf.mxu0
      %v762 = vadd.f32 %v713, %v761
      %v763 = vpop.f32.mrf.mxu0
      %v764 = vadd.f32 %v715, %v763
      %765 = vmatmul.bf16.gmra.mxu0 %v278
      %v766 = vpop.f32.mrf.mxu0
      %v767 = vadd.f32 %v718, %v766
      %v768 = vpop.f32.mrf.mxu0
      %v769 = vadd.f32 %v720, %v768
      %770 = vdwg.mxu0
      %771 = vmatpush.bf16.msra.mxu0 %v574
      %772 = vmatpush.bf16.msra.mxu0 %v570
      %773 = vmatpush.bf16.msra.mxu0 %v566
      %774 = vmatpush.bf16.msra.mxu0 %v562
      %775 = vmatpush.bf16.msra.mxu0 %v558
      %776 = vmatpush.bf16.msra.mxu0 %v554
      %777 = vmatpush.bf16.msra.mxu0 %v550
      %778 = vmatpush.bf16.msra.mxu0 %v546
      %779 = vmatmul.bf16.gmra.mxu0 %v263
      %v780 = vpop.f32.mrf.mxu0
      %v781 = vadd.f32 %v346, %v780
      %v782 = vpop.f32.mrf.mxu0
      %v783 = vadd.f32 %v346, %v782
      %784 = vmatmul.bf16.gmra.mxu0 %v265
      %v785 = vpop.f32.mrf.mxu0
      %v786 = vadd.f32 %v346, %v785
      %v787 = vpop.f32.mrf.mxu0
      %v788 = vadd.f32 %v346, %v787
      %789 = vmatmul.bf16.gmra.mxu0 %v267
      %v790 = vpop.f32.mrf.mxu0
      %v791 = vadd.f32 %v346, %v790
      %v792 = vpop.f32.mrf.mxu0
      %v793 = vadd.f32 %v346, %v792
      %794 = vmatmul.bf16.gmra.mxu0 %v269
      %v795 = vpop.f32.mrf.mxu0
      %v796 = vadd.f32 %v346, %v795
      %v797 = vpop.f32.mrf.mxu0
      %v798 = vadd.f32 %v346, %v797
      %799 = vmatmul.bf16.gmra.mxu0 %v271
      %v800 = vpop.f32.mrf.mxu0
      %v801 = vadd.f32 %v346, %v800
      %v802 = vpop.f32.mrf.mxu0
      %v803 = vadd.f32 %v346, %v802
      %804 = vmatmul.bf16.gmra.mxu0 %v273
      %v805 = vpop.f32.mrf.mxu0
      %v806 = vadd.f32 %v346, %v805
      %v807 = vpop.f32.mrf.mxu0
      %v808 = vadd.f32 %v346, %v807
      %809 = vmatmul.bf16.gmra.mxu0 %v275
      %v810 = vpop.f32.mrf.mxu0
      %v811 = vadd.f32 %v346, %v810
      %v812 = vpop.f32.mrf.mxu0
      %v813 = vadd.f32 %v346, %v812
      %814 = vmatmul.bf16.gmra.mxu0 %v277
      %v815 = vpop.f32.mrf.mxu0
      %v816 = vadd.f32 %v346, %v815
      %v817 = vpop.f32.mrf.mxu0
      %v818 = vadd.f32 %v346, %v817
      %819 = vdwg.mxu0
      %820 = vmatpush.bf16.msra.mxu0 %v606
      %821 = vmatpush.bf16.msra.mxu0 %v602
      %822 = vmatpush.bf16.msra.mxu0 %v598
      %823 = vmatpush.bf16.msra.mxu0 %v594
      %824 = vmatpush.bf16.msra.mxu0 %v590
      %825 = vmatpush.bf16.msra.mxu0 %v586
      %826 = vmatpush.bf16.msra.mxu0 %v582
      %827 = vmatpush.bf16.msra.mxu0 %v578
      %828 = vmatmul.bf16.gmra.mxu0 %v264
      %v829 = vpop.f32.mrf.mxu0
      %v830 = vadd.f32 %v781, %v829
      %v831 = vpop.f32.mrf.mxu0
      %v832 = vadd.f32 %v783, %v831
      %833 = vmatmul.bf16.gmra.mxu0 %v266
      %v834 = vpop.f32.mrf.mxu0
      %v835 = vadd.f32 %v786, %v834
      %v836 = vpop.f32.mrf.mxu0
      %v837 = vadd.f32 %v788, %v836
      %838 = vmatmul.bf16.gmra.mxu0 %v268
      %v839 = vpop.f32.mrf.mxu0
      %v840 = vadd.f32 %v791, %v839
      %v841 = vpop.f32.mrf.mxu0
      %v842 = vadd.f32 %v793, %v841
      %843 = vmatmul.bf16.gmra.mxu0 %v270
      %v844 = vpop.f32.mrf.mxu0
      %v845 = vadd.f32 %v796, %v844
      %v846 = vpop.f32.mrf.mxu0
      %v847 = vadd.f32 %v798, %v846
      %848 = vmatmul.bf16.gmra.mxu0 %v272
      %v849 = vpop.f32.mrf.mxu0
      %v850 = vadd.f32 %v801, %v849
      %v851 = vpop.f32.mrf.mxu0
      %v852 = vadd.f32 %v803, %v851
      %853 = vmatmul.bf16.gmra.mxu0 %v274
      %v854 = vpop.f32.mrf.mxu0
      %v855 = vadd.f32 %v806, %v854
      %v856 = vpop.f32.mrf.mxu0
      %v857 = vadd.f32 %v808, %v856
      %858 = vmatmul.bf16.gmra.mxu0 %v276
      %v859 = vpop.f32.mrf.mxu0
      %v860 = vadd.f32 %v811, %v859
      %v861 = vpop.f32.mrf.mxu0
      %v862 = vadd.f32 %v813, %v861
      %863 = vmatmul.bf16.gmra.mxu0 %v278
      %v864 = vpop.f32.mrf.mxu0
      %v865 = vadd.f32 %v816, %v864
      %v866 = vpop.f32.mrf.mxu0
      %v867 = vadd.f32 %v818, %v866
      %868 = vdwg.mxu0
      %869 = vmatpush.bf16.msra.mxu0 %v575
      %870 = vmatpush.bf16.msra.mxu0 %v571
      %871 = vmatpush.bf16.msra.mxu0 %v567
      %872 = vmatpush.bf16.msra.mxu0 %v563
      %873 = vmatpush.bf16.msra.mxu0 %v559
      %874 = vmatpush.bf16.msra.mxu0 %v555
      %875 = vmatpush.bf16.msra.mxu0 %v551
      %876 = vmatpush.bf16.msra.mxu0 %v547
      %877 = vmatmul.bf16.gmra.mxu0 %v263
      %v878 = vpop.f32.mrf.mxu0
      %v879 = vadd.f32 %v347, %v878
      %v880 = vpop.f32.mrf.mxu0
      %v881 = vadd.f32 %v347, %v880
      %882 = vmatmul.bf16.gmra.mxu0 %v265
      %v883 = vpop.f32.mrf.mxu0
      %v884 = vadd.f32 %v347, %v883
      %v885 = vpop.f32.mrf.mxu0
      %v886 = vadd.f32 %v347, %v885
      %887 = vmatmul.bf16.gmra.mxu0 %v267
      %v888 = vpop.f32.mrf.mxu0
      %v889 = vadd.f32 %v347, %v888
      %v890 = vpop.f32.mrf.mxu0
      %v891 = vadd.f32 %v347, %v890
      %892 = vmatmul.bf16.gmra.mxu0 %v269
      %v893 = vpop.f32.mrf.mxu0
      %v894 = vadd.f32 %v347, %v893
      %v895 = vpop.f32.mrf.mxu0
      %v896 = vadd.f32 %v347, %v895
      %897 = vmatmul.bf16.gmra.mxu0 %v271
      %v898 = vpop.f32.mrf.mxu0
      %v899 = vadd.f32 %v347, %v898
      %v900 = vpop.f32.mrf.mxu0
      %v901 = vadd.f32 %v347, %v900
      %902 = vmatmul.bf16.gmra.mxu0 %v273
      %v903 = vpop.f32.mrf.mxu0
      %v904 = vadd.f32 %v347, %v903
      %v905 = vpop.f32.mrf.mxu0
      %v906 = vadd.f32 %v347, %v905
      %907 = vmatmul.bf16.gmra.mxu0 %v275
      %v908 = vpop.f32.mrf.mxu0
      %v909 = vadd.f32 %v347, %v908
      %v910 = vpop.f32.mrf.mxu0
      %v911 = vadd.f32 %v347, %v910
      %912 = vmatmul.bf16.gmra.mxu0 %v277
      %v913 = vpop.f32.mrf.mxu0
      %v914 = vadd.f32 %v347, %v913
      %v915 = vpop.f32.mrf.mxu0
      %v916 = vadd.f32 %v347, %v915
      %917 = vdwg.mxu0
      %918 = vmatpush.bf16.msra.mxu0 %v607
      %919 = vmatpush.bf16.msra.mxu0 %v603
      %920 = vmatpush.bf16.msra.mxu0 %v599
      %921 = vmatpush.bf16.msra.mxu0 %v595
      %922 = vmatpush.bf16.msra.mxu0 %v591
      %923 = vmatpush.bf16.msra.mxu0 %v587
      %924 = vmatpush.bf16.msra.mxu0 %v583
      %925 = vmatpush.bf16.msra.mxu0 %v579
      %926 = vmatmul.bf16.gmra.mxu0 %v264
      %v927 = vpop.f32.mrf.mxu0
      %v928 = vadd.f32 %v879, %v927
      %v929 = vpop.f32.mrf.mxu0
      %v930 = vadd.f32 %v881, %v929
      %931 = vmatmul.bf16.gmra.mxu0 %v266
      %v932 = vpop.f32.mrf.mxu0
      %v933 = vadd.f32 %v884, %v932
      %v934 = vpop.f32.mrf.mxu0
      %v935 = vadd.f32 %v886, %v934
      %936 = vmatmul.bf16.gmra.mxu0 %v268
      %v937 = vpop.f32.mrf.mxu0
      %v938 = vadd.f32 %v889, %v937
      %v939 = vpop.f32.mrf.mxu0
      %v940 = vadd.f32 %v891, %v939
      %941 = vmatmul.bf16.gmra.mxu0 %v270
      %v942 = vpop.f32.mrf.mxu0
      %v943 = vadd.f32 %v894, %v942
      %v944 = vpop.f32.mrf.mxu0
      %v945 = vadd.f32 %v896, %v944
      %946 = vmatmul.bf16.gmra.mxu0 %v272
      %v947 = vpop.f32.mrf.mxu0
      %v948 = vadd.f32 %v899, %v947
      %v949 = vpop.f32.mrf.mxu0
      %v950 = vadd.f32 %v901, %v949
      %951 = vmatmul.bf16.gmra.mxu0 %v274
      %v952 = vpop.f32.mrf.mxu0
      %v953 = vadd.f32 %v904, %v952
      %v954 = vpop.f32.mrf.mxu0
      %v955 = vadd.f32 %v906, %v954
      %956 = vmatmul.bf16.gmra.mxu0 %v276
      %v957 = vpop.f32.mrf.mxu0
      %v958 = vadd.f32 %v909, %v957
      %v959 = vpop.f32.mrf.mxu0
      %v960 = vadd.f32 %v911, %v959
      %961 = vmatmul.bf16.gmra.mxu0 %v278
      %v962 = vpop.f32.mrf.mxu0
      %v963 = vadd.f32 %v914, %v962
      %v964 = vpop.f32.mrf.mxu0
      %v965 = vadd.f32 %v916, %v964
      %966 = vdwg.mxu0
      %967 = vmatpush.bf16.msra.mxu0 %v576
      %968 = vmatpush.bf16.msra.mxu0 %v572
      %969 = vmatpush.bf16.msra.mxu0 %v568
      %970 = vmatpush.bf16.msra.mxu0 %v564
      %971 = vmatpush.bf16.msra.mxu0 %v560
      %972 = vmatpush.bf16.msra.mxu0 %v556
      %973 = vmatpush.bf16.msra.mxu0 %v552
      %974 = vmatpush.bf16.msra.mxu0 %v548
      %975 = vmatmul.bf16.gmra.mxu0 %v263
      %v976 = vpop.f32.mrf.mxu0
      %v977 = vadd.f32 %v348, %v976
      %v978 = vpop.f32.mrf.mxu0
      %v979 = vadd.f32 %v348, %v978
      %980 = vmatmul.bf16.gmra.mxu0 %v265
      %v981 = vpop.f32.mrf.mxu0
      %v982 = vadd.f32 %v348, %v981
      %v983 = vpop.f32.mrf.mxu0
      %v984 = vadd.f32 %v348, %v983
      %985 = vmatmul.bf16.gmra.mxu0 %v267
      %v986 = vpop.f32.mrf.mxu0
      %v987 = vadd.f32 %v348, %v986
      %v988 = vpop.f32.mrf.mxu0
      %v989 = vadd.f32 %v348, %v988
      %990 = vmatmul.bf16.gmra.mxu0 %v269
      %v991 = vpop.f32.mrf.mxu0
      %v992 = vadd.f32 %v348, %v991
      %v993 = vpop.f32.mrf.mxu0
      %v994 = vadd.f32 %v348, %v993
      %995 = vmatmul.bf16.gmra.mxu0 %v271
      %v996 = vpop.f32.mrf.mxu0
      %v997 = vadd.f32 %v348, %v996
      %v998 = vpop.f32.mrf.mxu0
      %v999 = vadd.f32 %v348, %v998
      %1000 = vmatmul.bf16.gmra.mxu0 %v273
      %v1001 = vpop.f32.mrf.mxu0
      %v1002 = vadd.f32 %v348, %v1001
      %v1003 = vpop.f32.mrf.mxu0
      %v1004 = vadd.f32 %v348, %v1003
      %1005 = vmatmul.bf16.gmra.mxu0 %v275
      %v1006 = vpop.f32.mrf.mxu0
      %v1007 = vadd.f32 %v348, %v1006
      %v1008 = vpop.f32.mrf.mxu0
      %v1009 = vadd.f32 %v348, %v1008
      %1010 = vmatmul.bf16.gmra.mxu0 %v277
      %v1011 = vpop.f32.mrf.mxu0
      %v1012 = vadd.f32 %v348, %v1011
      %v1013 = vpop.f32.mrf.mxu0
      %v1014 = vadd.f32 %v348, %v1013
      %1015 = vdwg.mxu0
      %1016 = vmatpush.bf16.msra.mxu0 %v608
      %1017 = vmatpush.bf16.msra.mxu0 %v604
      %1018 = vmatpush.bf16.msra.mxu0 %v600
      %1019 = vmatpush.bf16.msra.mxu0 %v596
      %1020 = vmatpush.bf16.msra.mxu0 %v592
      %1021 = vmatpush.bf16.msra.mxu0 %v588
      %1022 = vmatpush.bf16.msra.mxu0 %v584
      %1023 = vmatpush.bf16.msra.mxu0 %v580
      %1024 = vmatmul.bf16.gmra.mxu0 %v264
      %v1025 = vpop.f32.mrf.mxu0
      %v1026 = vadd.f32 %v977, %v1025
      %v1027 = vpop.f32.mrf.mxu0
      %v1028 = vadd.f32 %v979, %v1027
      %1029 = vmatmul.bf16.gmra.mxu0 %v266
      %v1030 = vpop.f32.mrf.mxu0
      %v1031 = vadd.f32 %v982, %v1030
      %v1032 = vpop.f32.mrf.mxu0
      %v1033 = vadd.f32 %v984, %v1032
      %1034 = vmatmul.bf16.gmra.mxu0 %v268
      %v1035 = vpop.f32.mrf.mxu0
      %v1036 = vadd.f32 %v987, %v1035
      %v1037 = vpop.f32.mrf.mxu0
      %v1038 = vadd.f32 %v989, %v1037
      %1039 = vmatmul.bf16.gmra.mxu0 %v270
      %v1040 = vpop.f32.mrf.mxu0
      %v1041 = vadd.f32 %v992, %v1040
      %v1042 = vpop.f32.mrf.mxu0
      %v1043 = vadd.f32 %v994, %v1042
      %1044 = vmatmul.bf16.gmra.mxu0 %v272
      %v1045 = vpop.f32.mrf.mxu0
      %v1046 = vadd.f32 %v997, %v1045
      %v1047 = vpop.f32.mrf.mxu0
      %v1048 = vadd.f32 %v999, %v1047
      %1049 = vmatmul.bf16.gmra.mxu0 %v274
      %v1050 = vpop.f32.mrf.mxu0
      %v1051 = vadd.f32 %v1002, %v1050
      %v1052 = vpop.f32.mrf.mxu0
      %v1053 = vadd.f32 %v1004, %v1052
      %1054 = vmatmul.bf16.gmra.mxu0 %v276
      %v1055 = vpop.f32.mrf.mxu0
      %v1056 = vadd.f32 %v1007, %v1055
      %v1057 = vpop.f32.mrf.mxu0
      %v1058 = vadd.f32 %v1009, %v1057
      %1059 = vmatmul.bf16.gmra.mxu0 %v278
      %v1060 = vpop.f32.mrf.mxu0
      %v1061 = vadd.f32 %v1012, %v1060
      %v1062 = vpop.f32.mrf.mxu0
      %v1063 = vadd.f32 %v1014, %v1062
      %1064 = vdwg.mxu0
      %v1065 = vmax.f32 %v732, 0.0
      %v1066 = vmax.f32 %v830, 0.0
      %v1067 = vmax.f32 %v928, 0.0
      %v1068 = vmax.f32 %v1026, 0.0
      %v1069 = vmax.f32 %v734, 0.0
      %v1070 = vmax.f32 %v832, 0.0
      %v1071 = vmax.f32 %v930, 0.0
      %v1072 = vmax.f32 %v1028, 0.0
      %v1073 = vmax.f32 %v737, 0.0
      %v1074 = vmax.f32 %v835, 0.0
      %v1075 = vmax.f32 %v933, 0.0
      %v1076 = vmax.f32 %v1031, 0.0
      %v1077 = vmax.f32 %v739, 0.0
      %v1078 = vmax.f32 %v837, 0.0
      %v1079 = vmax.f32 %v935, 0.0
      %v1080 = vmax.f32 %v1033, 0.0
      %v1081 = vmax.f32 %v742, 0.0
      %v1082 = vmax.f32 %v840, 0.0
      %v1083 = vmax.f32 %v938, 0.0
      %v1084 = vmax.f32 %v1036, 0.0
      %v1085 = vmax.f32 %v744, 0.0
      %v1086 = vmax.f32 %v842, 0.0
      %v1087 = vmax.f32 %v940, 0.0
      %v1088 = vmax.f32 %v1038, 0.0
      %v1089 = vmax.f32 %v747, 0.0
      %v1090 = vmax.f32 %v845, 0.0
      %v1091 = vmax.f32 %v943, 0.0
      %v1092 = vmax.f32 %v1041, 0.0
      %v1093 = vmax.f32 %v749, 0.0
      %v1094 = vmax.f32 %v847, 0.0
      %v1095 = vmax.f32 %v945, 0.0
      %v1096 = vmax.f32 %v1043, 0.0
      %v1097 = vmax.f32 %v752, 0.0
      %v1098 = vmax.f32 %v850, 0.0
      %v1099 = vmax.f32 %v948, 0.0
      %v1100 = vmax.f32 %v1046, 0.0
      %v1101 = vmax.f32 %v754, 0.0
      %v1102 = vmax.f32 %v852, 0.0
      %v1103 = vmax.f32 %v950, 0.0
      %v1104 = vmax.f32 %v1048, 0.0
      %v1105 = vmax.f32 %v757, 0.0
      %v1106 = vmax.f32 %v855, 0.0
      %v1107 = vmax.f32 %v953, 0.0
      %v1108 = vmax.f32 %v1051, 0.0
      %v1109 = vmax.f32 %v759, 0.0
      %v1110 = vmax.f32 %v857, 0.0
      %v1111 = vmax.f32 %v955, 0.0
      %v1112 = vmax.f32 %v1053, 0.0
      %v1113 = vmax.f32 %v762, 0.0
      %v1114 = vmax.f32 %v860, 0.0
      %v1115 = vmax.f32 %v958, 0.0
      %v1116 = vmax.f32 %v1056, 0.0
      %v1117 = vmax.f32 %v764, 0.0
      %v1118 = vmax.f32 %v862, 0.0
      %v1119 = vmax.f32 %v960, 0.0
      %v1120 = vmax.f32 %v1058, 0.0
      %v1121 = vmax.f32 %v767, 0.0
      %v1122 = vmax.f32 %v865, 0.0
      %v1123 = vmax.f32 %v963, 0.0
      %v1124 = vmax.f32 %v1061, 0.0
      %v1125 = vmax.f32 %v769, 0.0
      %v1126 = vmax.f32 %v867, 0.0
      %v1127 = vmax.f32 %v965, 0.0
      %v1128 = vmax.f32 %v1063, 0.0
      %v1129 = vpack.c.bf16 %v1069, %v1065
      %v1130 = vpack.c.bf16 %v1070, %v1066
      %v1131 = vpack.c.bf16 %v1071, %v1067
      %v1132 = vpack.c.bf16 %v1072, %v1068
      %v1133 = vpack.c.bf16 %v1077, %v1073
      %v1134 = vpack.c.bf16 %v1078, %v1074
      %v1135 = vpack.c.bf16 %v1079, %v1075
      %v1136 = vpack.c.bf16 %v1080, %v1076
      %v1137 = vpack.c.bf16 %v1085, %v1081
      %v1138 = vpack.c.bf16 %v1086, %v1082
      %v1139 = vpack.c.bf16 %v1087, %v1083
      %v1140 = vpack.c.bf16 %v1088, %v1084
      %v1141 = vpack.c.bf16 %v1093, %v1089
      %v1142 = vpack.c.bf16 %v1094, %v1090
      %v1143 = vpack.c.bf16 %v1095, %v1091
      %v1144 = vpack.c.bf16 %v1096, %v1092
      %v1145 = vpack.c.bf16 %v1101, %v1097
      %v1146 = vpack.c.bf16 %v1102, %v1098
      %v1147 = vpack.c.bf16 %v1103, %v1099
      %v1148 = vpack.c.bf16 %v1104, %v1100
      %v1149 = vpack.c.bf16 %v1109, %v1105
      %v1150 = vpack.c.bf16 %v1110, %v1106
      %v1151 = vpack.c.bf16 %v1111, %v1107
      %v1152 = vpack.c.bf16 %v1112, %v1108
      %v1153 = vpack.c.bf16 %v1117, %v1113
      %v1154 = vpack.c.bf16 %v1118, %v1114
      %v1155 = vpack.c.bf16 %v1119, %v1115
      %v1156 = vpack.c.bf16 %v1120, %v1116
      %v1157 = vpack.c.bf16 %v1125, %v1121
      %v1158 = vpack.c.bf16 %v1126, %v1122
      %v1159 = vpack.c.bf16 %v1127, %v1123
      %v1160 = vpack.c.bf16 %v1128, %v1124
      %v1161 = vld [vmem:[%s3] sm:$0xf]
      %v1162 = vld [vmem:[%s3 + $0x4] sm:$0xf]
      %v1163 = vld [vmem:[%s3 + $0x8] sm:$0xf]
      %v1164 = vld [vmem:[%s3 + $0xc] sm:$0xf]
      %v1165 = vld [vmem:[%s3 + $0x10] sm:$0xf]
      %v1166 = vld [vmem:[%s3 + $0x14] sm:$0xf]
      %v1167 = vld [vmem:[%s3 + $0x18] sm:$0xf]
      %v1168 = vld [vmem:[%s3 + $0x1c] sm:$0xf]
      %v1169 = vld [vmem:[%s3 + $0x20] sm:$0xf]
      %v1170 = vld [vmem:[%s3 + $0x24] sm:$0xf]
      %v1171 = vld [vmem:[%s3 + $0x28] sm:$0xf]
      %v1172 = vld [vmem:[%s3 + $0x2c] sm:$0xf]
      %v1173 = vld [vmem:[%s3 + $0x30] sm:$0xf]
      %v1174 = vld [vmem:[%s3 + $0x34] sm:$0xf]
      %v1175 = vld [vmem:[%s3 + $0x38] sm:$0xf]
      %v1176 = vld [vmem:[%s3 + $0x3c] sm:$0xf]
      %v1177 = vld [vmem:[%s3 + $0x40] sm:$0xf]
      %v1178 = vld [vmem:[%s3 + $0x44] sm:$0xf]
      %v1179 = vld [vmem:[%s3 + $0x48] sm:$0xf]
      %v1180 = vld [vmem:[%s3 + $0x4c] sm:$0xf]
      %v1181 = vld [vmem:[%s3 + $0x50] sm:$0xf]
      %v1182 = vld [vmem:[%s3 + $0x54] sm:$0xf]
      %v1183 = vld [vmem:[%s3 + $0x58] sm:$0xf]
      %v1184 = vld [vmem:[%s3 + $0x5c] sm:$0xf]
      %v1185 = vld [vmem:[%s3 + $0x60] sm:$0xf]
      %v1186 = vld [vmem:[%s3 + $0x64] sm:$0xf]
      %v1187 = vld [vmem:[%s3 + $0x68] sm:$0xf]
      %v1188 = vld [vmem:[%s3 + $0x6c] sm:$0xf]
      %v1189 = vld [vmem:[%s3 + $0x70] sm:$0xf]
      %v1190 = vld [vmem:[%s3 + $0x74] sm:$0xf]
      %v1191 = vld [vmem:[%s3 + $0x78] sm:$0xf]
      %v1192 = vld [vmem:[%s3 + $0x7c] sm:$0xf]
      %v1193 = vld [vmem:[%s3 + $0x80] sm:$0xf]
      %v1194 = vld [vmem:[%s3 + $0x84] sm:$0xf]
      %v1195 = vld [vmem:[%s3 + $0x88] sm:$0xf]
      %v1196 = vld [vmem:[%s3 + $0x8c] sm:$0xf]
      %v1197 = vld [vmem:[%s3 + $0x90] sm:$0xf]
      %v1198 = vld [vmem:[%s3 + $0x94] sm:$0xf]
      %v1199 = vld [vmem:[%s3 + $0x98] sm:$0xf]
      %v1200 = vld [vmem:[%s3 + $0x9c] sm:$0xf]
      %v1201 = vld [vmem:[%s3 + $0xa0] sm:$0xf]
      %v1202 = vld [vmem:[%s3 + $0xa4] sm:$0xf]
      %v1203 = vld [vmem:[%s3 + $0xa8] sm:$0xf]
      %v1204 = vld [vmem:[%s3 + $0xac] sm:$0xf]
      %v1205 = vld [vmem:[%s3 + $0xb0] sm:$0xf]
      %v1206 = vld [vmem:[%s3 + $0xb4] sm:$0xf]
      %v1207 = vld [vmem:[%s3 + $0xb8] sm:$0xf]
      %v1208 = vld [vmem:[%s3 + $0xbc] sm:$0xf]
      %v1209 = vld [vmem:[%s3 + $0xc0] sm:$0xf]
      %v1210 = vld [vmem:[%s3 + $0xc4] sm:$0xf]
      %v1211 = vld [vmem:[%s3 + $0xc8] sm:$0xf]
      %v1212 = vld [vmem:[%s3 + $0xcc] sm:$0xf]
      %v1213 = vld [vmem:[%s3 + $0xd0] sm:$0xf]
      %v1214 = vld [vmem:[%s3 + $0xd4] sm:$0xf]
      %v1215 = vld [vmem:[%s3 + $0xd8] sm:$0xf]
      %v1216 = vld [vmem:[%s3 + $0xdc] sm:$0xf]
      %v1217 = vld [vmem:[%s3 + $0xe0] sm:$0xf]
      %v1218 = vld [vmem:[%s3 + $0xe4] sm:$0xf]
      %v1219 = vld [vmem:[%s3 + $0xe8] sm:$0xf]
      %v1220 = vld [vmem:[%s3 + $0xec] sm:$0xf]
      %v1221 = vld [vmem:[%s3 + $0xf0] sm:$0xf]
      %v1222 = vld [vmem:[%s3 + $0xf4] sm:$0xf]
      %v1223 = vld [vmem:[%s3 + $0xf8] sm:$0xf]
      %v1224 = vld [vmem:[%s3 + $0xfc] sm:$0xf]
      %v1225 = vld [vmem:[%s4] sm:$0x1]
      %v1227 = vperm.slane %v1225, 0
      %v1293 = vunpack.c.l.b16 %v1161
      %v1294 = vunpack.c.l.b16 %v1162
      %v1295 = vunpack.c.l.b16 %v1163
      %v1296 = vunpack.c.l.b16 %v1164
      %v1297 = vunpack.c.l.b16 %v1165
      %v1298 = vunpack.c.l.b16 %v1166
      %v1299 = vunpack.c.l.b16 %v1167
      %v1300 = vunpack.c.l.b16 %v1168
      %v1301 = vunpack.c.l.b16 %v1169
      %v1302 = vunpack.c.l.b16 %v1170
      %v1303 = vunpack.c.l.b16 %v1171
      %v1304 = vunpack.c.l.b16 %v1172
      %v1305 = vunpack.c.l.b16 %v1173
      %v1306 = vunpack.c.l.b16 %v1174
      %v1307 = vunpack.c.l.b16 %v1175
      %v1308 = vunpack.c.l.b16 %v1176
      %v1309 = vunpack.c.l.b16 %v1177
      %v1310 = vunpack.c.l.b16 %v1178
      %v1311 = vunpack.c.l.b16 %v1179
      %v1312 = vunpack.c.l.b16 %v1180
      %v1313 = vunpack.c.l.b16 %v1181
      %v1314 = vunpack.c.l.b16 %v1182
      %v1315 = vunpack.c.l.b16 %v1183
      %v1316 = vunpack.c.l.b16 %v1184
      %v1317 = vunpack.c.l.b16 %v1185
      %v1318 = vunpack.c.l.b16 %v1186
      %v1319 = vunpack.c.l.b16 %v1187
      %v1320 = vunpack.c.l.b16 %v1188
      %v1321 = vunpack.c.l.b16 %v1189
      %v1322 = vunpack.c.l.b16 %v1190
      %v1323 = vunpack.c.l.b16 %v1191
      %v1324 = vunpack.c.l.b16 %v1192
      %v1325 = vunpack.c.l.b16 %v1193
      %v1326 = vunpack.c.l.b16 %v1194
      %v1327 = vunpack.c.l.b16 %v1195
      %v1328 = vunpack.c.l.b16 %v1196
      %v1329 = vunpack.c.l.b16 %v1197
      %v1330 = vunpack.c.l.b16 %v1198
      %v1331 = vunpack.c.l.b16 %v1199
      %v1332 = vunpack.c.l.b16 %v1200
      %v1333 = vunpack.c.l.b16 %v1201
      %v1334 = vunpack.c.l.b16 %v1202
      %v1335 = vunpack.c.l.b16 %v1203
      %v1336 = vunpack.c.l.b16 %v1204
      %v1337 = vunpack.c.l.b16 %v1205
      %v1338 = vunpack.c.l.b16 %v1206
      %v1339 = vunpack.c.l.b16 %v1207
      %v1340 = vunpack.c.l.b16 %v1208
      %v1341 = vunpack.c.l.b16 %v1209
      %v1342 = vunpack.c.l.b16 %v1210
      %v1343 = vunpack.c.l.b16 %v1211
      %v1344 = vunpack.c.l.b16 %v1212
      %v1345 = vunpack.c.l.b16 %v1213
      %v1346 = vunpack.c.l.b16 %v1214
      %v1347 = vunpack.c.l.b16 %v1215
      %v1348 = vunpack.c.l.b16 %v1216
      %v1349 = vunpack.c.l.b16 %v1217
      %v1350 = vunpack.c.l.b16 %v1218
      %v1351 = vunpack.c.l.b16 %v1219
      %v1352 = vunpack.c.l.b16 %v1220
      %v1353 = vunpack.c.l.b16 %v1221
      %v1354 = vunpack.c.l.b16 %v1222
      %v1355 = vunpack.c.l.b16 %v1223
      %v1356 = vunpack.c.l.b16 %v1224
      %v1357 = vpack.c.b16 %v1294, %v1293
      %v1358 = vpack.c.b16 %v1296, %v1295
      %v1359 = vpack.c.b16 %v1298, %v1297
      %v1360 = vpack.c.b16 %v1300, %v1299
      %v1361 = vpack.c.b16 %v1302, %v1301
      %v1362 = vpack.c.b16 %v1304, %v1303
      %v1363 = vpack.c.b16 %v1306, %v1305
      %v1364 = vpack.c.b16 %v1308, %v1307
      %v1365 = vpack.c.b16 %v1310, %v1309
      %v1366 = vpack.c.b16 %v1312, %v1311
      %v1367 = vpack.c.b16 %v1314, %v1313
      %v1368 = vpack.c.b16 %v1316, %v1315
      %v1369 = vpack.c.b16 %v1318, %v1317
      %v1370 = vpack.c.b16 %v1320, %v1319
      %v1371 = vpack.c.b16 %v1322, %v1321
      %v1372 = vpack.c.b16 %v1324, %v1323
      %v1373 = vpack.c.b16 %v1326, %v1325
      %v1374 = vpack.c.b16 %v1328, %v1327
      %v1375 = vpack.c.b16 %v1330, %v1329
      %v1376 = vpack.c.b16 %v1332, %v1331
      %v1377 = vpack.c.b16 %v1334, %v1333
      %v1378 = vpack.c.b16 %v1336, %v1335
      %v1379 = vpack.c.b16 %v1338, %v1337
      %v1380 = vpack.c.b16 %v1340, %v1339
      %v1381 = vpack.c.b16 %v1342, %v1341
      %v1382 = vpack.c.b16 %v1344, %v1343
      %v1383 = vpack.c.b16 %v1346, %v1345
      %v1384 = vpack.c.b16 %v1348, %v1347
      %v1385 = vpack.c.b16 %v1350, %v1349
      %v1386 = vpack.c.b16 %v1352, %v1351
      %v1387 = vpack.c.b16 %v1354, %v1353
      %v1388 = vpack.c.b16 %v1356, %v1355
      %1421 = vmatpush.bf16.msra.mxu0 %v1364
      %1422 = vmatpush.bf16.msra.mxu0 %v1363
      %1423 = vmatpush.bf16.msra.mxu0 %v1362
      %1424 = vmatpush.bf16.msra.mxu0 %v1361
      %1425 = vmatpush.bf16.msra.mxu0 %v1360
      %1426 = vmatpush.bf16.msra.mxu0 %v1359
      %1427 = vmatpush.bf16.msra.mxu0 %v1358
      %1428 = vmatpush.bf16.msra.mxu0 %v1357
      %1429 = vmatmul.bf16.gmra.mxu0 %v1129
      %v1430 = vpop.f32.mrf.mxu0
      %v1431 = vadd.f32 %v1227, %v1430
      %v1432 = vpop.f32.mrf.mxu0
      %v1433 = vadd.f32 %v1227, %v1432
      %1434 = vmatmul.bf16.gmra.mxu0 %v1133
      %v1435 = vpop.f32.mrf.mxu0
      %v1436 = vadd.f32 %v1227, %v1435
      %v1437 = vpop.f32.mrf.mxu0
      %v1438 = vadd.f32 %v1227, %v1437
      %1439 = vmatmul.bf16.gmra.mxu0 %v1137
      %v1440 = vpop.f32.mrf.mxu0
      %v1441 = vadd.f32 %v1227, %v1440
      %v1442 = vpop.f32.mrf.mxu0
      %v1443 = vadd.f32 %v1227, %v1442
      %1444 = vmatmul.bf16.gmra.mxu0 %v1141
      %v1445 = vpop.f32.mrf.mxu0
      %v1446 = vadd.f32 %v1227, %v1445
      %v1447 = vpop.f32.mrf.mxu0
      %v1448 = vadd.f32 %v1227, %v1447
      %1449 = vmatmul.bf16.gmra.mxu0 %v1145
      %v1450 = vpop.f32.mrf.mxu0
      %v1451 = vadd.f32 %v1227, %v1450
      %v1452 = vpop.f32.mrf.mxu0
      %v1453 = vadd.f32 %v1227, %v1452
      %1454 = vmatmul.bf16.gmra.mxu0 %v1149
      %v1455 = vpop.f32.mrf.mxu0
      %v1456 = vadd.f32 %v1227, %v1455
      %v1457 = vpop.f32.mrf.mxu0
      %v1458 = vadd.f32 %v1227, %v1457
      %1459 = vmatmul.bf16.gmra.mxu0 %v1153
      %v1460 = vpop.f32.mrf.mxu0
      %v1461 = vadd.f32 %v1227, %v1460
      %v1462 = vpop.f32.mrf.mxu0
      %v1463 = vadd.f32 %v1227, %v1462
      %1464 = vmatmul.bf16.gmra.mxu0 %v1157
      %v1465 = vpop.f32.mrf.mxu0
      %v1466 = vadd.f32 %v1227, %v1465
      %v1467 = vpop.f32.mrf.mxu0
      %v1468 = vadd.f32 %v1227, %v1467
      %1469 = vdwg.mxu0
      %1470 = vmatpush.bf16.msra.mxu0 %v1372
      %1471 = vmatpush.bf16.msra.mxu0 %v1371
      %1472 = vmatpush.bf16.msra.mxu0 %v1370
      %1473 = vmatpush.bf16.msra.mxu0 %v1369
      %1474 = vmatpush.bf16.msra.mxu0 %v1368
      %1475 = vmatpush.bf16.msra.mxu0 %v1367
      %1476 = vmatpush.bf16.msra.mxu0 %v1366
      %1477 = vmatpush.bf16.msra.mxu0 %v1365
      %1478 = vmatmul.bf16.gmra.mxu0 %v1130
      %v1479 = vpop.f32.mrf.mxu0
      %v1480 = vadd.f32 %v1431, %v1479
      %v1481 = vpop.f32.mrf.mxu0
      %v1482 = vadd.f32 %v1433, %v1481
      %1483 = vmatmul.bf16.gmra.mxu0 %v1134
      %v1484 = vpop.f32.mrf.mxu0
      %v1485 = vadd.f32 %v1436, %v1484
      %v1486 = vpop.f32.mrf.mxu0
      %v1487 = vadd.f32 %v1438, %v1486
      %1488 = vmatmul.bf16.gmra.mxu0 %v1138
      %v1489 = vpop.f32.mrf.mxu0
      %v1490 = vadd.f32 %v1441, %v1489
      %v1491 = vpop.f32.mrf.mxu0
      %v1492 = vadd.f32 %v1443, %v1491
      %1493 = vmatmul.bf16.gmra.mxu0 %v1142
      %v1494 = vpop.f32.mrf.mxu0
      %v1495 = vadd.f32 %v1446, %v1494
      %v1496 = vpop.f32.mrf.mxu0
      %v1497 = vadd.f32 %v1448, %v1496
      %1498 = vmatmul.bf16.gmra.mxu0 %v1146
      %v1499 = vpop.f32.mrf.mxu0
      %v1500 = vadd.f32 %v1451, %v1499
      %v1501 = vpop.f32.mrf.mxu0
      %v1502 = vadd.f32 %v1453, %v1501
      %1503 = vmatmul.bf16.gmra.mxu0 %v1150
      %v1504 = vpop.f32.mrf.mxu0
      %v1505 = vadd.f32 %v1456, %v1504
      %v1506 = vpop.f32.mrf.mxu0
      %v1507 = vadd.f32 %v1458, %v1506
      %1508 = vmatmul.bf16.gmra.mxu0 %v1154
      %v1509 = vpop.f32.mrf.mxu0
      %v1510 = vadd.f32 %v1461, %v1509
      %v1511 = vpop.f32.mrf.mxu0
      %v1512 = vadd.f32 %v1463, %v1511
      %1513 = vmatmul.bf16.gmra.mxu0 %v1158
      %v1514 = vpop.f32.mrf.mxu0
      %v1515 = vadd.f32 %v1466, %v1514
      %v1516 = vpop.f32.mrf.mxu0
      %v1517 = vadd.f32 %v1468, %v1516
      %1518 = vdwg.mxu0
      %1519 = vmatpush.bf16.msra.mxu0 %v1380
      %1520 = vmatpush.bf16.msra.mxu0 %v1379
      %1521 = vmatpush.bf16.msra.mxu0 %v1378
      %1522 = vmatpush.bf16.msra.mxu0 %v1377
      %1523 = vmatpush.bf16.msra.mxu0 %v1376
      %1524 = vmatpush.bf16.msra.mxu0 %v1375
      %1525 = vmatpush.bf16.msra.mxu0 %v1374
      %1526 = vmatpush.bf16.msra.mxu0 %v1373
      %1527 = vmatmul.bf16.gmra.mxu0 %v1131
      %v1528 = vpop.f32.mrf.mxu0
      %v1529 = vadd.f32 %v1480, %v1528
      %v1530 = vpop.f32.mrf.mxu0
      %v1531 = vadd.f32 %v1482, %v1530
      %1532 = vmatmul.bf16.gmra.mxu0 %v1135
      %v1533 = vpop.f32.mrf.mxu0
      %v1534 = vadd.f32 %v1485, %v1533
      %v1535 = vpop.f32.mrf.mxu0
      %v1536 = vadd.f32 %v1487, %v1535
      %1537 = vmatmul.bf16.gmra.mxu0 %v1139
      %v1538 = vpop.f32.mrf.mxu0
      %v1539 = vadd.f32 %v1490, %v1538
      %v1540 = vpop.f32.mrf.mxu0
      %v1541 = vadd.f32 %v1492, %v1540
      %1542 = vmatmul.bf16.gmra.mxu0 %v1143
      %v1543 = vpop.f32.mrf.mxu0
      %v1544 = vadd.f32 %v1495, %v1543
      %v1545 = vpop.f32.mrf.mxu0
      %v1546 = vadd.f32 %v1497, %v1545
      %1547 = vmatmul.bf16.gmra.mxu0 %v1147
      %v1548 = vpop.f32.mrf.mxu0
      %v1549 = vadd.f32 %v1500, %v1548
      %v1550 = vpop.f32.mrf.mxu0
      %v1551 = vadd.f32 %v1502, %v1550
      %1552 = vmatmul.bf16.gmra.mxu0 %v1151
      %v1553 = vpop.f32.mrf.mxu0
      %v1554 = vadd.f32 %v1505, %v1553
      %v1555 = vpop.f32.mrf.mxu0
      %v1556 = vadd.f32 %v1507, %v1555
      %1557 = vmatmul.bf16.gmra.mxu0 %v1155
      %v1558 = vpop.f32.mrf.mxu0
      %v1559 = vadd.f32 %v1510, %v1558
      %v1560 = vpop.f32.mrf.mxu0
      %v1561 = vadd.f32 %v1512, %v1560
      %1562 = vmatmul.bf16.gmra.mxu0 %v1159
      %v1563 = vpop.f32.mrf.mxu0
      %v1564 = vadd.f32 %v1515, %v1563
      %v1565 = vpop.f32.mrf.mxu0
      %v1566 = vadd.f32 %v1517, %v1565
      %1567 = vdwg.mxu0
      %1568 = vmatpush.bf16.msra.mxu0 %v1388
      %1569 = vmatpush.bf16.msra.mxu0 %v1387
      %1570 = vmatpush.bf16.msra.mxu0 %v1386
      %1571 = vmatpush.bf16.msra.mxu0 %v1385
      %1572 = vmatpush.bf16.msra.mxu0 %v1384
      %1573 = vmatpush.bf16.msra.mxu0 %v1383
      %1574 = vmatpush.bf16.msra.mxu0 %v1382
      %1575 = vmatpush.bf16.msra.mxu0 %v1381
      %1576 = vmatmul.bf16.gmra.mxu0 %v1132
      %v1577 = vpop.f32.mrf.mxu0
      %v1578 = vadd.f32 %v1529, %v1577
      %v1579 = vpop.f32.mrf.mxu0
      %v1580 = vadd.f32 %v1531, %v1579
      %1581 = vmatmul.bf16.gmra.mxu0 %v1136
      %v1582 = vpop.f32.mrf.mxu0
      %v1583 = vadd.f32 %v1534, %v1582
      %v1584 = vpop.f32.mrf.mxu0
      %v1585 = vadd.f32 %v1536, %v1584
      %1586 = vmatmul.bf16.gmra.mxu0 %v1140
      %v1587 = vpop.f32.mrf.mxu0
      %v1588 = vadd.f32 %v1539, %v1587
      %v1589 = vpop.f32.mrf.mxu0
      %v1590 = vadd.f32 %v1541, %v1589
      %1591 = vmatmul.bf16.gmra.mxu0 %v1144
      %v1592 = vpop.f32.mrf.mxu0
      %v1593 = vadd.f32 %v1544, %v1592
      %v1594 = vpop.f32.mrf.mxu0
      %v1595 = vadd.f32 %v1546, %v1594
      %1596 = vmatmul.bf16.gmra.mxu0 %v1148
      %v1597 = vpop.f32.mrf.mxu0
      %v1598 = vadd.f32 %v1549, %v1597
      %v1599 = vpop.f32.mrf.mxu0
      %v1600 = vadd.f32 %v1551, %v1599
      %1601 = vmatmul.bf16.gmra.mxu0 %v1152
      %v1602 = vpop.f32.mrf.mxu0
      %v1603 = vadd.f32 %v1554, %v1602
      %v1604 = vpop.f32.mrf.mxu0
      %v1605 = vadd.f32 %v1556, %v1604
      %1606 = vmatmul.bf16.gmra.mxu0 %v1156
      %v1607 = vpop.f32.mrf.mxu0
      %v1608 = vadd.f32 %v1559, %v1607
      %v1609 = vpop.f32.mrf.mxu0
      %v1610 = vadd.f32 %v1561, %v1609
      %1611 = vmatmul.bf16.gmra.mxu0 %v1160
      %v1612 = vpop.f32.mrf.mxu0
      %v1613 = vadd.f32 %v1564, %v1612
      %v1614 = vpop.f32.mrf.mxu0
      %v1615 = vadd.f32 %v1566, %v1614
      %1616 = vdwg.mxu0
      %1617 = vst [vmem:[%s229] sm:$0xff] %v1578
      %1618 = vst [vmem:[%s229 + $0x8] sm:$0xff] %v1580
      %1619 = vst [vmem:[%s229 + $0x10] sm:$0xff] %v1583
      %1620 = vst [vmem:[%s229 + $0x18] sm:$0xff] %v1585
      %1621 = vst [vmem:[%s229 + $0x20] sm:$0xff] %v1588
      %1622 = vst [vmem:[%s229 + $0x28] sm:$0xff] %v1590
      %1623 = vst [vmem:[%s229 + $0x30] sm:$0xff] %v1593
      %1624 = vst [vmem:[%s229 + $0x38] sm:$0xff] %v1595
      %1625 = vst [vmem:[%s229 + $0x40] sm:$0xff] %v1598
      %1626 = vst [vmem:[%s229 + $0x48] sm:$0xff] %v1600
      %1627 = vst [vmem:[%s229 + $0x50] sm:$0xff] %v1603
      %1628 = vst [vmem:[%s229 + $0x58] sm:$0xff] %v1605
      %1629 = vst [vmem:[%s229 + $0x60] sm:$0xff] %v1608
      %1630 = vst [vmem:[%s229 + $0x68] sm:$0xff] %v1610
      %1631 = vst [vmem:[%s229 + $0x70] sm:$0xff] %v1613
      %1632 = vst [vmem:[%s229 + $0x78] sm:$0xff] %v1615
      %s1633 = smul.u32 16, %s16
      %p1634 = scmp.lt.s32.totalorder %s1633, 63
      %s1635 = scalar_select %p1634, %s1633, 63
      %s1636 = smul.addr %s1635, 8
      %s1637 = scalar_lea.vmem %s5, %s1636
      // Predicated region
      $region41: #{twolayer_forward.1} parent=39 // pred_check
        %p1638 = pneg %p144
      $region42: #{twolayer_forward.1} parent=39 // pred_check_branch
        %1640 = sbr.rel (%p1638) target = $region44
      $region43: #{twolayer_forward.1} parent=39 // pred_region
        %s1641 = smul.u32 16, %s16
      $region44: #{twolayer_forward.1} parent=39 // pred_fallthru
        _
    $region40: #{twolayer_forward.1} parent=5 // pred_fallthru
      _
    %p1642 = scmp.le.s32.totalorder 2, %s11
    // Predicated region
    $region45: #{twolayer_forward.1} parent=5 // pred_check
      %p1643 = pneg %p1642
    $region46: #{twolayer_forward.1} parent=5 // pred_check_branch
      %1645 = sbr.rel (%p1643) target = $region48
    $region47: #{twolayer_forward.1} parent=5 // pred_region
      %s1646 = ssub.s32 %s11, 2
      // Predicated region
      $region49: #{twolayer_forward.1} parent=47 // pred_check
        %p1647 = pneg %p150
      $region50: #{twolayer_forward.1} parent=47 // pred_check_branch
        %1649 = sbr.rel (%p1647) target = $region52
      $region51: #{twolayer_forward.1} parent=47 // pred_region
        %s1650 = smul.u32 16, %s17
        %p1651 = scmp.lt.s32.totalorder %s1650, 63
        %s1652 = scalar_select %p1651, %s1650, 63
        %s1653 = smul.addr %s1652, 8
        %s1654 = scalar_lea.vmem %s5, %s1653
      $region52: #{twolayer_forward.1} parent=47 // pred_fallthru
        _
    $region48: #{twolayer_forward.1} parent=5 // pred_fallthru
      _
  $region6: #{twolayer_forward.1} parent=0 // loop_footer
    %s15 = sadd.s32 1, %s11
  $region7: #{twolayer_forward.1} parent=0 // loop_footer_branch
    %10 = sbr.rel target = $region3
  $region8: #{twolayer_forward.1} parent=0 // loop_exit
    _

</llo_original>
